<compile_context>
chip_gen: v7x
topology: tpu7x:2x2x1
jax: 0.10.0
libtpu: 0.0.40
codegen_flags: <defaults>
</compile_context>

<pallas_src>
import functools

import jax
import jax.numpy as jnp
from jax.experimental import pallas as pl
from jax.experimental.pallas import tpu as pltpu


# --------------------------------------------------------------------------- kernel
def _se_bottleneck_kernel(x_ref,                      # (1, H, W, Cin)  resident per sample
                          w1_ref, b1_ref,             # (Cin, P) bf16, (1, P) f32
                          w2_ref, b2_ref,             # (9P, P)  bf16, (1, P) f32
                          w3_ref, b3_ref,             # (P, C4)  bf16, (1, C4) f32
                          sew1_ref, sew2_ref,         # (C4, hid), (hid, C4) bf16
                          out_ref,                    # (1, H, W, C4) f32, resident per sample
                          *, block_rows):
    r = pl.program_id(1)
    num_r = pl.num_programs(1)
    _, H, W, Cin = x_ref.shape
    TH = block_rows
    P = w1_ref.shape[1]
    C4 = w3_ref.shape[1]

    row0 = pl.multiple_of(r * TH, TH)

    # conv1 (1x1) + bn1-bias + relu for a group of rows (f32 result).
    def conv1(xrows, nrows):
        t = jnp.dot(xrows.reshape(nrows * W, Cin).astype(jnp.bfloat16), w1_ref[...],
                    preferred_element_type=jnp.float32)
        t = jnp.maximum(t + b1_ref[...], 0.0)
        return t.reshape(nrows, W, P)

    # Main TH rows plus recomputed 1-row halos (1x1 conv halo recompute is cheap).
    t1_mid = conv1(x_ref[0, pl.ds(row0, TH)], TH)
    t1_top = conv1(x_ref[0, pl.ds(jnp.maximum(row0 - 1, 0), 1)], 1)
    t1_bot = conv1(x_ref[0, pl.ds(jnp.minimum(row0 + TH, H - 1), 1)], 1)
    t1_top = jnp.where(r > 0, t1_top, jnp.zeros_like(t1_top))          # zero pad at top edge
    t1_bot = jnp.where(r < num_r - 1, t1_bot, jnp.zeros_like(t1_bot))  # zero pad at bottom edge

    # Zero-pad only the 1-wide W border (no full-buffer zeroing).
    t1_pad = jnp.concatenate([t1_top, t1_mid, t1_bot], axis=0)         # (TH+2, W, P)
    zcol = jnp.zeros((TH + 2, 1, P), jnp.float32)
    t1_pad = jnp.concatenate([zcol, t1_pad, zcol], axis=1)             # (TH+2, W+2, P)

    # conv2 (3x3) as ONE im2col matmul with K = 9*P (tap-major K, matches w2 layout).
    cols = [t1_pad[dy:dy + TH, dx:dx + W, :] for dy in range(3) for dx in range(3)]
    im2col = jnp.concatenate(cols, axis=-1).reshape(TH * W, 9 * P).astype(jnp.bfloat16)
    t2 = jnp.dot(im2col, w2_ref[...], preferred_element_type=jnp.float32)
    t2 = jnp.maximum(t2 + b2_ref[...], 0.0)

    # conv3 (1x1) + bn3-bias (pre-SE, pre-residual) -> stash in the resident output block.
    t3 = jnp.dot(t2.astype(jnp.bfloat16), w3_ref[...],
                 preferred_element_type=jnp.float32) + b3_ref[...]
    out_ref[0, pl.ds(row0, TH)] = t3.reshape(TH, W, C4)

    # Last row block of the sample: SE (pool + 2 FCs + sigmoid), channel scale,
    # residual add and final ReLU, all on the VMEM-resident buffer.
    @pl.when(r == num_r - 1)
    def _():
        t3_full = out_ref[...]                                          # (1, H, W, C4)
        pooled = jnp.sum(t3_full.reshape(H * W, C4), axis=0, keepdims=True) * (1.0 / (H * W))
        h = jnp.maximum(jnp.dot(pooled.astype(jnp.bfloat16), sew1_ref[...],
                                preferred_element_type=jnp.float32), 0.0)
        y = jax.nn.sigmoid(jnp.dot(h.astype(jnp.bfloat16), sew2_ref[...],
                                   preferred_element_type=jnp.float32))
        out = t3_full * y.reshape(1, 1, 1, C4) + x_ref[...]
        out_ref[...] = jnp.maximum(out, 0.0).astype(out_ref.dtype)


# --------------------------------------------------------------------------- wrapper
def se_bottleneck(x, prep, *, block_rows=8):
    """x: (N, H, W, Cin) f32 NHWC, Cin == planes*4 (downsample=None). Returns NHWC f32."""
    w1, b1, w2, b2, w3, b3, sew1, sew2 = prep
    N, H, W, Cin = x.shape
    P = w1.shape[1]
    C4 = w3.shape[1]
    hid = sew1.shape[1]
    assert Cin == C4, "downsample=None requires inplanes == planes * 4"
    TH = block_rows if H % block_rows == 0 else H
    R = H // TH

    def full(shape):
        return pl.BlockSpec(shape, lambda n, r: (0,) * len(shape))

    flops = int(2 * N * H * W * (Cin * P + 9 * P * P + P * C4)
                + 4 * N * C4 * hid + 3 * N * H * W * C4)
    bytes_acc = int(4 * (x.size + N * H * W * C4 + b1.size + b2.size + b3.size)
                    + 2 * (w1.size + w2.size + w3.size + sew1.size + sew2.size))

    kernel = functools.partial(_se_bottleneck_kernel, block_rows=TH)

    out = pl.pallas_call(
        kernel,
        grid_spec=pltpu.PrefetchScalarGridSpec(
            num_scalar_prefetch=0,
            grid=(N, R),
            in_specs=[
                pl.BlockSpec((1, H, W, Cin), lambda n, r: (n, 0, 0, 0)),  # resident per sample
                full((Cin, P)), full((1, P)),
                full((9 * P, P)), full((1, P)),
                full((P, C4)), full((1, C4)),
                full((C4, hid)), full((hid, C4)),
            ],
            out_specs=pl.BlockSpec((1, H, W, C4), lambda n, r: (n, 0, 0, 0)),
        ),
        out_shape=jax.ShapeDtypeStruct((N, H, W, C4), jnp.float32),
        compiler_params=pltpu.CompilerParams(
            dimension_semantics=("parallel", "arbitrary"),
            vmem_limit_bytes=32 * 1024 * 1024,
        ),
        cost_estimate=pl.CostEstimate(
            flops=flops, transcendentals=int(N * C4), bytes_accessed=bytes_acc),
    )(x, w1, b1, w2, b2, w3, b3, sew1, sew2)
    return out


def se_bottleneck_nchw(x_nchw, prep, **kw):
    """PyTorch-layout convenience wrapper (transpose once at the network boundary)."""
    out = se_bottleneck(jnp.transpose(x_nchw, (0, 2, 3, 1)), prep, **kw)
    return jnp.transpose(out, (0, 3, 1, 2))


# --------------------------------------------------------------------------- params
def make_params(key, inplanes, planes, reduction=16):
    C4 = planes * 4
    assert C4 % reduction == 0
    hid = C4 // reduction
    ks = jax.random.split(key, 8)

    def bn(k, c):
        kg, kb, km, kv = jax.random.split(k, 4)
        gamma = 1.0 + 0.1 * jax.random.normal(kg, (c,), jnp.float32)
        beta = 0.1 * jax.random.normal(kb, (c,), jnp.float32)
        mean = 0.1 * jax.random.normal(km, (c,), jnp.float32)
        var = 1.0 + 0.1 * jnp.abs(jax.random.normal(kv, (c,), jnp.float32))
        return gamma, beta, mean, var

    return dict(
        w1=0.1 * jax.random.normal(ks[0], (inplanes, planes), jnp.float32),   # (in, out)
        w2=0.1 * jax.random.normal(ks[1], (9, planes, planes), jnp.float32),  # tap=(ky*3+kx)
        w3=0.1 * jax.random.normal(ks[2], (planes, C4), jnp.float32),
        bn1=bn(ks[3], planes), bn2=bn(ks[4], planes), bn3=bn(ks[5], C4),
        sew1=0.1 * jax.random.normal(ks[6], (C4, hid), jnp.float32),          # Linear bias=False
        sew2=0.1 * jax.random.normal(ks[7], (hid, C4), jnp.float32),
    )


def prepare_params(raw, eps=1e-5):
    """Fold BN (inference-mode) scale into conv weights; cast matmul weights to bf16."""
    def fold(w, bn):
        gamma, beta, mean, var = bn
        s = gamma / jnp.sqrt(var + eps)
        return (w * s).astype(jnp.bfloat16), (beta - mean * s).reshape(1, -1).astype(jnp.float32)

    w1, b1 = fold(raw["w1"], raw["bn1"])
    w2, b2 = fold(raw["w2"], raw["bn2"])
    w2 = w2.reshape(-1, w2.shape[-1])          # (9P, P), tap-major K layout
    w3, b3 = fold(raw["w3"], raw["bn3"])
    return (w1, b1, w2, b2, w3, b3,
            raw["sew1"].astype(jnp.bfloat16), raw["sew2"].astype(jnp.bfloat16))


# --------------------------------------------------------------------------- pure-JAX reference
def se_bottleneck_ref(x, prep):
    """Same math & precision policy (bf16 matmul inputs, f32 accumulation) via lax.conv."""
    w1, b1, w2, b2, w3, b3, sew1, sew2 = prep
    Cin, P = w1.shape
    C4 = w3.shape[1]
    dn = ('NHWC', 'HWIO', 'NHWC')
    conv = functools.partial(jax.lax.conv_general_dilated, window_strides=(1, 1),
                             dimension_numbers=dn, preferred_element_type=jnp.float32)

    t = conv(x.astype(jnp.bfloat16), w1.reshape(1, 1, Cin, P), padding='VALID')
    t = jnp.maximum(t + b1, 0.0)
    t = conv(t.astype(jnp.bfloat16), w2.reshape(3, 3, P, P), padding=((1, 1), (1, 1)))
    t = jnp.maximum(t + b2, 0.0)
    t = conv(t.astype(jnp.bfloat16), w3.reshape(1, 1, P, C4), padding='VALID') + b3
    pooled = jnp.mean(t, axis=(1, 2))
    h = jnp.maximum(jnp.dot(pooled.astype(jnp.bfloat16), sew1,
                            preferred_element_type=jnp.float32), 0.0)
    y = jax.nn.sigmoid(jnp.dot(h.astype(jnp.bfloat16), sew2,
                               preferred_element_type=jnp.float32))
    return jnp.maximum(t * y[:, None, None, :] + x, 0.0)


# --------------------------------------------------------------------------- main
if __name__ == "__main__":
    # Small but lane-dense shapes consistent with the module: residual path requires
    # inplanes == planes * 4 when downsample is None; planes=32 -> C4 = Cin = 128 lanes.
    N, planes, H, W = 2, 32, 16, 16
    inplanes = planes * 4                           # 128
    key = jax.random.PRNGKey(0)
    kx, kp = jax.random.split(key)

    # NHWC end-to-end (a PyTorch NCHW caller would transpose once at the network boundary).
    x = jax.random.normal(kx, (N, H, W, inplanes), jnp.float32)
    prep = prepare_params(make_params(kp, inplanes, planes, reduction=16))

    out = se_bottleneck(x, prep, block_rows=8)
    out = jax.block_until_ready(out)

    ref = se_bottleneck_ref(x, prep)
    assert out.shape == (N, H, W, planes * 4), out.shape
    max_err = float(jnp.max(jnp.abs(out - ref)))
    assert jnp.allclose(out, ref, atol=2e-2, rtol=2e-2), max_err

    print("KERNEL_OK")
</pallas_src>

<mosaic_0001>
module attributes {stable_mosaic.version = 11 : i64} {
  func.func @_se_bottleneck_kernel(%arg0: i32, %arg1: i32, %arg2: memref<1x16x16x128xf32, #tpu.memory_space<vmem>>, %arg3: memref<128x32xbf16, #tpu.memory_space<vmem>>, %arg4: memref<1x32xf32, #tpu.memory_space<vmem>>, %arg5: memref<288x32xbf16, #tpu.memory_space<vmem>>, %arg6: memref<1x32xf32, #tpu.memory_space<vmem>>, %arg7: memref<32x128xbf16, #tpu.memory_space<vmem>>, %arg8: memref<1x128xf32, #tpu.memory_space<vmem>>, %arg9: memref<128x8xbf16, #tpu.memory_space<vmem>>, %arg10: memref<8x128xbf16, #tpu.memory_space<vmem>>, %arg11: memref<1x16x16x128xf32, #tpu.memory_space<vmem>>) attributes {dimension_semantics = [#tpu.dimension_semantics<parallel>, #tpu.dimension_semantics<arbitrary>], iteration_bounds = array<i64: 2, 2>, scalar_prefetch = 0 : i64, scratch_operands = 0 : i64, tpu.core_type = #tpu.core_type<tc>, window_params = [{transform_indices = @transform_0, window_bounds = array<i64: 1, 16, 16, 128>}, {pipeline_mode = #tpu.pipeline_mode<synchronous>, transform_indices = @transform_1, window_bounds = array<i64: 128, 32>}, {pipeline_mode = #tpu.pipeline_mode<synchronous>, transform_indices = @transform_2, window_bounds = array<i64: 1, 32>}, {pipeline_mode = #tpu.pipeline_mode<synchronous>, transform_indices = @transform_3, window_bounds = array<i64: 288, 32>}, {pipeline_mode = #tpu.pipeline_mode<synchronous>, transform_indices = @transform_4, window_bounds = array<i64: 1, 32>}, {pipeline_mode = #tpu.pipeline_mode<synchronous>, transform_indices = @transform_5, window_bounds = array<i64: 32, 128>}, {pipeline_mode = #tpu.pipeline_mode<synchronous>, transform_indices = @transform_6, window_bounds = array<i64: 1, 128>}, {pipeline_mode = #tpu.pipeline_mode<synchronous>, transform_indices = @transform_7, window_bounds = array<i64: 128, 8>}, {pipeline_mode = #tpu.pipeline_mode<synchronous>, transform_indices = @transform_8, window_bounds = array<i64: 8, 128>}, {transform_indices = @transform_9, window_bounds = array<i64: 1, 16, 16, 128>}]} {
    %c8_i32 = arith.constant 8 : i32
    %0 = arith.muli %arg1, %c8_i32 : i32
    %1 = tpu.assume_multiple %0, 8 : i32
    %c0 = arith.constant 0 : index
    %2 = arith.index_cast %1 : i32 to index
    %c0_0 = arith.constant 0 : index
    %c0_1 = arith.constant 0 : index
    %3 = vector.load %arg2[%c0, %2, %c0_0, %c0_1] : memref<1x16x16x128xf32, #tpu.memory_space<vmem>>, vector<1x8x16x128xf32>
    %4 = vector.shape_cast %3 : vector<1x8x16x128xf32> to vector<8x16x128xf32>
    %5 = vector.shape_cast %4 : vector<8x16x128xf32> to vector<128x128xf32>
    %6 = arith.truncf %5 : vector<128x128xf32> to vector<128x128xbf16>
    %c0_2 = arith.constant 0 : index
    %c0_3 = arith.constant 0 : index
    %7 = vector.load %arg3[%c0_2, %c0_3] : memref<128x32xbf16, #tpu.memory_space<vmem>>, vector<128x32xbf16>
    %cst = arith.constant dense<0.000000e+00> : vector<128x32xf32>
    %8 = tpu.matmul %6, %7, %cst {dimension_numbers = #tpu.dot_dimension_numbers<[1], [0], [0], [1], [0, 0, 1, 1], [], []>} : vector<128x128xbf16>, vector<128x32xbf16>, vector<128x32xf32> -> vector<128x32xf32>
    %c0_4 = arith.constant 0 : index
    %c0_5 = arith.constant 0 : index
    %9 = vector.load %arg4[%c0_4, %c0_5] : memref<1x32xf32, #tpu.memory_space<vmem>>, vector<1x32xf32>
    %10 = vector.broadcast %9 : vector<1x32xf32> to vector<128x32xf32>
    %11 = arith.addf %8, %10 : vector<128x32xf32>
    %cst_6 = arith.constant 0.000000e+00 : f32
    %12 = vector.broadcast %cst_6 : f32 to vector<128x32xf32>
    %13 = arith.maximumf %11, %12 : vector<128x32xf32>
    %14 = vector.shape_cast %13 : vector<128x32xf32> to vector<8x16x32xf32>
    %c1_i32 = arith.constant 1 : i32
    %15 = arith.subi %1, %c1_i32 : i32
    %c0_i32 = arith.constant 0 : i32
    %16 = arith.maxsi %15, %c0_i32 : i32
    %c0_7 = arith.constant 0 : index
    %17 = arith.index_cast %16 : i32 to index
    %c0_8 = arith.constant 0 : index
    %c0_9 = arith.constant 0 : index
    %18 = vector.load %arg2[%c0_7, %17, %c0_8, %c0_9] : memref<1x16x16x128xf32, #tpu.memory_space<vmem>>, vector<1x1x16x128xf32>
    %19 = vector.shape_cast %18 : vector<1x1x16x128xf32> to vector<1x16x128xf32>
    %20 = vector.shape_cast %19 : vector<1x16x128xf32> to vector<16x128xf32>
    %21 = arith.truncf %20 : vector<16x128xf32> to vector<16x128xbf16>
    %c0_10 = arith.constant 0 : index
    %c0_11 = arith.constant 0 : index
    %22 = vector.load %arg3[%c0_10, %c0_11] : memref<128x32xbf16, #tpu.memory_space<vmem>>, vector<128x32xbf16>
    %cst_12 = arith.constant dense<0.000000e+00> : vector<16x32xf32>
    %23 = tpu.matmul %21, %22, %cst_12 {dimension_numbers = #tpu.dot_dimension_numbers<[1], [0], [0], [1], [0, 0, 1, 1], [], []>} : vector<16x128xbf16>, vector<128x32xbf16>, vector<16x32xf32> -> vector<16x32xf32>
    %c0_13 = arith.constant 0 : index
    %c0_14 = arith.constant 0 : index
    %24 = vector.load %arg4[%c0_13, %c0_14] : memref<1x32xf32, #tpu.memory_space<vmem>>, vector<1x32xf32>
    %25 = vector.broadcast %24 : vector<1x32xf32> to vector<16x32xf32>
    %26 = arith.addf %23, %25 : vector<16x32xf32>
    %cst_15 = arith.constant 0.000000e+00 : f32
    %27 = vector.broadcast %cst_15 : f32 to vector<16x32xf32>
    %28 = arith.maximumf %26, %27 : vector<16x32xf32>
    %29 = vector.shape_cast %28 : vector<16x32xf32> to vector<1x16x32xf32>
    %c8_i32_16 = arith.constant 8 : i32
    %30 = arith.addi %1, %c8_i32_16 : i32
    %c15_i32 = arith.constant 15 : i32
    %31 = arith.minsi %30, %c15_i32 : i32
    %c0_17 = arith.constant 0 : index
    %32 = arith.index_cast %31 : i32 to index
    %c0_18 = arith.constant 0 : index
    %c0_19 = arith.constant 0 : index
    %33 = vector.load %arg2[%c0_17, %32, %c0_18, %c0_19] : memref<1x16x16x128xf32, #tpu.memory_space<vmem>>, vector<1x1x16x128xf32>
    %34 = vector.shape_cast %33 : vector<1x1x16x128xf32> to vector<1x16x128xf32>
    %35 = vector.shape_cast %34 : vector<1x16x128xf32> to vector<16x128xf32>
    %36 = arith.truncf %35 : vector<16x128xf32> to vector<16x128xbf16>
    %c0_20 = arith.constant 0 : index
    %c0_21 = arith.constant 0 : index
    %37 = vector.load %arg3[%c0_20, %c0_21] : memref<128x32xbf16, #tpu.memory_space<vmem>>, vector<128x32xbf16>
    %cst_22 = arith.constant dense<0.000000e+00> : vector<16x32xf32>
    %38 = tpu.matmul %36, %37, %cst_22 {dimension_numbers = #tpu.dot_dimension_numbers<[1], [0], [0], [1], [0, 0, 1, 1], [], []>} : vector<16x128xbf16>, vector<128x32xbf16>, vector<16x32xf32> -> vector<16x32xf32>
    %c0_23 = arith.constant 0 : index
    %c0_24 = arith.constant 0 : index
    %39 = vector.load %arg4[%c0_23, %c0_24] : memref<1x32xf32, #tpu.memory_space<vmem>>, vector<1x32xf32>
    %40 = vector.broadcast %39 : vector<1x32xf32> to vector<16x32xf32>
    %41 = arith.addf %38, %40 : vector<16x32xf32>
    %cst_25 = arith.constant 0.000000e+00 : f32
    %42 = vector.broadcast %cst_25 : f32 to vector<16x32xf32>
    %43 = arith.maximumf %41, %42 : vector<16x32xf32>
    %44 = vector.shape_cast %43 : vector<16x32xf32> to vector<1x16x32xf32>
    %c0_i32_26 = arith.constant 0 : i32
    %45 = arith.cmpi sgt, %arg1, %c0_i32_26 : i32
    %cst_27 = arith.constant 0.000000e+00 : f32
    %46 = vector.broadcast %cst_27 : f32 to vector<1x16x32xf32>
    %47 = arith.select %45, %29, %46 : vector<1x16x32xf32>
    %c1_i32_28 = arith.constant 1 : i32
    %48 = arith.cmpi slt, %arg1, %c1_i32_28 : i32
    %cst_29 = arith.constant 0.000000e+00 : f32
    %49 = vector.broadcast %cst_29 : f32 to vector<1x16x32xf32>
    %50 = arith.select %48, %44, %49 : vector<1x16x32xf32>
    %51 = tpu.concatenate %47, %14, %50 in 0 : vector<1x16x32xf32>, vector<8x16x32xf32>, vector<1x16x32xf32> -> vector<10x16x32xf32>
    %cst_30 = arith.constant 0.000000e+00 : f32
    %52 = vector.broadcast %cst_30 : f32 to vector<10x1x32xf32>
    %53 = tpu.concatenate %52, %51, %52 in 1 : vector<10x1x32xf32>, vector<10x16x32xf32>, vector<10x1x32xf32> -> vector<10x18x32xf32>
    %54 = vector.extract_strided_slice %53 {offsets = [0, 0, 0], sizes = [8, 16, 32], strides = [1, 1, 1]} : vector<10x18x32xf32> to vector<8x16x32xf32>
    %55 = vector.extract_strided_slice %53 {offsets = [0, 1, 0], sizes = [8, 16, 32], strides = [1, 1, 1]} : vector<10x18x32xf32> to vector<8x16x32xf32>
    %56 = vector.extract_strided_slice %53 {offsets = [0, 2, 0], sizes = [8, 16, 32], strides = [1, 1, 1]} : vector<10x18x32xf32> to vector<8x16x32xf32>
    %57 = vector.extract_strided_slice %53 {offsets = [1, 0, 0], sizes = [8, 16, 32], strides = [1, 1, 1]} : vector<10x18x32xf32> to vector<8x16x32xf32>
    %58 = vector.extract_strided_slice %53 {offsets = [1, 1, 0], sizes = [8, 16, 32], strides = [1, 1, 1]} : vector<10x18x32xf32> to vector<8x16x32xf32>
    %59 = vector.extract_strided_slice %53 {offsets = [1, 2, 0], sizes = [8, 16, 32], strides = [1, 1, 1]} : vector<10x18x32xf32> to vector<8x16x32xf32>
    %60 = vector.extract_strided_slice %53 {offsets = [2, 0, 0], sizes = [8, 16, 32], strides = [1, 1, 1]} : vector<10x18x32xf32> to vector<8x16x32xf32>
    %61 = vector.extract_strided_slice %53 {offsets = [2, 1, 0], sizes = [8, 16, 32], strides = [1, 1, 1]} : vector<10x18x32xf32> to vector<8x16x32xf32>
    %62 = vector.extract_strided_slice %53 {offsets = [2, 2, 0], sizes = [8, 16, 32], strides = [1, 1, 1]} : vector<10x18x32xf32> to vector<8x16x32xf32>
    %63 = tpu.concatenate %54, %55, %56, %57, %58, %59, %60, %61, %62 in 2 : vector<8x16x32xf32>, vector<8x16x32xf32>, vector<8x16x32xf32>, vector<8x16x32xf32>, vector<8x16x32xf32>, vector<8x16x32xf32>, vector<8x16x32xf32>, vector<8x16x32xf32>, vector<8x16x32xf32> -> vector<8x16x288xf32>
    %64 = vector.shape_cast %63 : vector<8x16x288xf32> to vector<128x288xf32>
    %65 = arith.truncf %64 : vector<128x288xf32> to vector<128x288xbf16>
    %c0_31 = arith.constant 0 : index
    %c0_32 = arith.constant 0 : index
    %66 = vector.load %arg5[%c0_31, %c0_32] : memref<288x32xbf16, #tpu.memory_space<vmem>>, vector<288x32xbf16>
    %cst_33 = arith.constant dense<0.000000e+00> : vector<128x32xf32>
    %67 = tpu.matmul %65, %66, %cst_33 {dimension_numbers = #tpu.dot_dimension_numbers<[1], [0], [0], [1], [0, 0, 1, 1], [], []>} : vector<128x288xbf16>, vector<288x32xbf16>, vector<128x32xf32> -> vector<128x32xf32>
    %c0_34 = arith.constant 0 : index
    %c0_35 = arith.constant 0 : index
    %68 = vector.load %arg6[%c0_34, %c0_35] : memref<1x32xf32, #tpu.memory_space<vmem>>, vector<1x32xf32>
    %69 = vector.broadcast %68 : vector<1x32xf32> to vector<128x32xf32>
    %70 = arith.addf %67, %69 : vector<128x32xf32>
    %cst_36 = arith.constant 0.000000e+00 : f32
    %71 = vector.broadcast %cst_36 : f32 to vector<128x32xf32>
    %72 = arith.maximumf %70, %71 : vector<128x32xf32>
    %73 = arith.truncf %72 : vector<128x32xf32> to vector<128x32xbf16>
    %c0_37 = arith.constant 0 : index
    %c0_38 = arith.constant 0 : index
    %74 = vector.load %arg7[%c0_37, %c0_38] : memref<32x128xbf16, #tpu.memory_space<vmem>>, vector<32x128xbf16>
    %cst_39 = arith.constant dense<0.000000e+00> : vector<128x128xf32>
    %75 = tpu.matmul %73, %74, %cst_39 {dimension_numbers = #tpu.dot_dimension_numbers<[1], [0], [0], [1], [0, 0, 1, 1], [], []>} : vector<128x32xbf16>, vector<32x128xbf16>, vector<128x128xf32> -> vector<128x128xf32>
    %c0_40 = arith.constant 0 : index
    %c0_41 = arith.constant 0 : index
    %76 = vector.load %arg8[%c0_40, %c0_41] : memref<1x128xf32, #tpu.memory_space<vmem>>, vector<1x128xf32>
    %77 = vector.broadcast %76 : vector<1x128xf32> to vector<128x128xf32>
    %78 = arith.addf %75, %77 : vector<128x128xf32>
    %79 = vector.shape_cast %78 : vector<128x128xf32> to vector<8x16x128xf32>
    %c0_42 = arith.constant 0 : index
    %80 = arith.index_cast %1 : i32 to index
    %c0_43 = arith.constant 0 : index
    %c0_44 = arith.constant 0 : index
    %81 = vector.load %arg11[%c0_42, %80, %c0_43, %c0_44] : memref<1x16x16x128xf32, #tpu.memory_space<vmem>>, vector<1x8x16x128xf32>
    %82 = vector.shape_cast %81 : vector<1x8x16x128xf32> to vector<8x16x128xf32>
    %83 = vector.shape_cast %79 : vector<8x16x128xf32> to vector<1x8x16x128xf32>
    tpu.vector_store %arg11[%c0_42, %80, %c0_43, %c0_44], %83 {strides = array<i32>} : memref<1x16x16x128xf32, #tpu.memory_space<vmem>>, vector<1x8x16x128xf32>,
    %c1_i32_45 = arith.constant 1 : i32
    %84 = arith.cmpi eq, %arg1, %c1_i32_45 : i32
    %85 = arith.extui %84 : i1 to i32
    %c0_i32_46 = arith.constant 0 : i32
    %86 = arith.cmpi ne, %85, %c0_i32_46 : i32
    scf.if %86 {
      %c0_47 = arith.constant 0 : index
      %c0_48 = arith.constant 0 : index
      %c0_49 = arith.constant 0 : index
      %c0_50 = arith.constant 0 : index
      %87 = vector.load %arg11[%c0_47, %c0_48, %c0_49, %c0_50] : memref<1x16x16x128xf32, #tpu.memory_space<vmem>>, vector<1x16x16x128xf32>
      %88 = vector.shape_cast %87 : vector<1x16x16x128xf32> to vector<256x128xf32>
      %cst_51 = arith.constant dense<0.000000e+00> : vector<128xf32>
      %89 = vector.multi_reduction <add>, %88, %cst_51 [0] : vector<256x128xf32> to vector<128xf32>
      %90 = vector.shape_cast %89 : vector<128xf32> to vector<1x128xf32>
      %cst_52 = arith.constant 3.906250e-03 : f32
      %91 = vector.broadcast %cst_52 : f32 to vector<1x128xf32>
      %92 = arith.mulf %90, %91 : vector<1x128xf32>
      %93 = arith.truncf %92 : vector<1x128xf32> to vector<1x128xbf16>
      %c0_53 = arith.constant 0 : index
      %c0_54 = arith.constant 0 : index
      %94 = vector.load %arg9[%c0_53, %c0_54] : memref<128x8xbf16, #tpu.memory_space<vmem>>, vector<128x8xbf16>
      %cst_55 = arith.constant dense<0.000000e+00> : vector<1x8xf32>
      %95 = tpu.matmul %93, %94, %cst_55 {dimension_numbers = #tpu.dot_dimension_numbers<[1], [0], [0], [1], [0, 0, 1, 1], [], []>} : vector<1x128xbf16>, vector<128x8xbf16>, vector<1x8xf32> -> vector<1x8xf32>
      %cst_56 = arith.constant 0.000000e+00 : f32
      %96 = vector.broadcast %cst_56 : f32 to vector<1x8xf32>
      %97 = arith.maximumf %95, %96 : vector<1x8xf32>
      %98 = arith.truncf %97 : vector<1x8xf32> to vector<1x8xbf16>
      %c0_57 = arith.constant 0 : index
      %c0_58 = arith.constant 0 : index
      %99 = vector.load %arg10[%c0_57, %c0_58] : memref<8x128xbf16, #tpu.memory_space<vmem>>, vector<8x128xbf16>
      %cst_59 = arith.constant dense<0.000000e+00> : vector<1x128xf32>
      %100 = tpu.matmul %98, %99, %cst_59 {dimension_numbers = #tpu.dot_dimension_numbers<[1], [0], [0], [1], [0, 0, 1, 1], [], []>} : vector<1x8xbf16>, vector<8x128xbf16>, vector<1x128xf32> -> vector<1x128xf32>
      %101 = arith.negf %100 : vector<1x128xf32>
      %102 = math.exp %101 : vector<1x128xf32>
      %cst_60 = arith.constant 1.000000e+00 : f32
      %103 = vector.broadcast %cst_60 : f32 to vector<1x128xf32>
      %104 = arith.addf %103, %102 : vector<1x128xf32>
      %105 = arith.divf %103, %104 : vector<1x128xf32>
      %106 = vector.shape_cast %105 : vector<1x128xf32> to vector<1x1x1x128xf32>
      %107 = vector.broadcast %106 : vector<1x1x1x128xf32> to vector<1x16x16x128xf32>
      %108 = arith.mulf %87, %107 : vector<1x16x16x128xf32>
      %c0_61 = arith.constant 0 : index
      %c0_62 = arith.constant 0 : index
      %c0_63 = arith.constant 0 : index
      %c0_64 = arith.constant 0 : index
      %109 = vector.load %arg2[%c0_61, %c0_62, %c0_63, %c0_64] : memref<1x16x16x128xf32, #tpu.memory_space<vmem>>, vector<1x16x16x128xf32>
      %110 = arith.addf %108, %109 : vector<1x16x16x128xf32>
      %cst_65 = arith.constant 0.000000e+00 : f32
      %111 = vector.broadcast %cst_65 : f32 to vector<1x16x16x128xf32>
      %112 = arith.maximumf %110, %111 : vector<1x16x16x128xf32>
      %c0_66 = arith.constant 0 : index
      %c0_67 = arith.constant 0 : index
      %c0_68 = arith.constant 0 : index
      %c0_69 = arith.constant 0 : index
      %113 = vector.load %arg11[%c0_66, %c0_67, %c0_68, %c0_69] : memref<1x16x16x128xf32, #tpu.memory_space<vmem>>, vector<1x16x16x128xf32>
      tpu.vector_store %arg11[%c0_66, %c0_67, %c0_68, %c0_69], %112 {strides = array<i32>} : memref<1x16x16x128xf32, #tpu.memory_space<vmem>>, vector<1x16x16x128xf32>,
    } else {
    }
    return
  }
  func.func @transform_0(%arg0: i32, %arg1: i32) -> (i32, i32, i32, i32) {
    %c0_i32 = arith.constant 0 : i32
    %c0_i32_0 = arith.constant 0 : i32
    %c0_i32_1 = arith.constant 0 : i32
    %c0_i32_2 = arith.constant 0 : i32
    return %arg0, %c0_i32, %c0_i32_0, %c0_i32_1 : i32, i32, i32, i32
  }
  func.func @transform_1(%arg0: i32, %arg1: i32) -> (i32, i32) {
    %c0_i32 = arith.constant 0 : i32
    %c0_i32_0 = arith.constant 0 : i32
    %c0_i32_1 = arith.constant 0 : i32
    return %c0_i32, %c0_i32_0 : i32, i32
  }
  func.func @transform_2(%arg0: i32, %arg1: i32) -> (i32, i32) {
    %c0_i32 = arith.constant 0 : i32
    %c0_i32_0 = arith.constant 0 : i32
    %c0_i32_1 = arith.constant 0 : i32
    return %c0_i32, %c0_i32_0 : i32, i32
  }
  func.func @transform_3(%arg0: i32, %arg1: i32) -> (i32, i32) {
    %c0_i32 = arith.constant 0 : i32
    %c0_i32_0 = arith.constant 0 : i32
    %c0_i32_1 = arith.constant 0 : i32
    return %c0_i32, %c0_i32_0 : i32, i32
  }
  func.func @transform_4(%arg0: i32, %arg1: i32) -> (i32, i32) {
    %c0_i32 = arith.constant 0 : i32
    %c0_i32_0 = arith.constant 0 : i32
    %c0_i32_1 = arith.constant 0 : i32
    return %c0_i32, %c0_i32_0 : i32, i32
  }
  func.func @transform_5(%arg0: i32, %arg1: i32) -> (i32, i32) {
    %c0_i32 = arith.constant 0 : i32
    %c0_i32_0 = arith.constant 0 : i32
    %c0_i32_1 = arith.constant 0 : i32
    return %c0_i32, %c0_i32_0 : i32, i32
  }
  func.func @transform_6(%arg0: i32, %arg1: i32) -> (i32, i32) {
    %c0_i32 = arith.constant 0 : i32
    %c0_i32_0 = arith.constant 0 : i32
    %c0_i32_1 = arith.constant 0 : i32
    return %c0_i32, %c0_i32_0 : i32, i32
  }
  func.func @transform_7(%arg0: i32, %arg1: i32) -> (i32, i32) {
    %c0_i32 = arith.constant 0 : i32
    %c0_i32_0 = arith.constant 0 : i32
    %c0_i32_1 = arith.constant 0 : i32
    return %c0_i32, %c0_i32_0 : i32, i32
  }
  func.func @transform_8(%arg0: i32, %arg1: i32) -> (i32, i32) {
    %c0_i32 = arith.constant 0 : i32
    %c0_i32_0 = arith.constant 0 : i32
    %c0_i32_1 = arith.constant 0 : i32
    return %c0_i32, %c0_i32_0 : i32, i32
  }
  func.func @transform_9(%arg0: i32, %arg1: i32) -> (i32, i32, i32, i32) {
    %c0_i32 = arith.constant 0 : i32
    %c0_i32_0 = arith.constant 0 : i32
    %c0_i32_1 = arith.constant 0 : i32
    %c0_i32_2 = arith.constant 0 : i32
    return %arg0, %c0_i32, %c0_i32_0, %c0_i32_1 : i32, i32, i32, i32
  }
}

</mosaic_0001>

<llo_original>
// kernel: tpu_custom_call.1
$region0: #{tpu_custom_call.1}
  #allocation0 [shape = 'u32[]', space=smem, size = 0x4, offset = 0x4, fixed_abs, tag = 'smem constant byte address 0x4 - core index']
  #allocation1 [shape = 'u32[144,128]{1,0:T(1,128)}', space=vmem, size = 0x12000, scoped, tag = 'internal scratch']
  %s0 = inlined_call_operand.hbm [shape: f32[2,16,16,128], index: 0, kind: input, shape index: {}]
  %s1 = inlined_call_operand.vmem [shape: bf16[128,32], index: 1, kind: input, shape index: {}]
  %s2 = inlined_call_operand.vmem [shape: f32[1,32], index: 2, kind: input, shape index: {}]
  %s3 = inlined_call_operand.vmem [shape: bf16[288,32], index: 3, kind: input, shape index: {}]
  %s4 = inlined_call_operand.vmem [shape: f32[1,32], index: 4, kind: input, shape index: {}]
  %s5 = inlined_call_operand.vmem [shape: bf16[32,128], index: 5, kind: input, shape index: {}]
  %s6 = inlined_call_operand.vmem [shape: f32[1,128], index: 6, kind: input, shape index: {}]
  %s7 = inlined_call_operand.vmem [shape: bf16[128,8], index: 7, kind: input, shape index: {}]
  %s8 = inlined_call_operand.vmem [shape: bf16[8,128], index: 8, kind: input, shape index: {}]
  %s9 = inlined_call_operand.hbm [shape: f32[2,16,16,128], index: 9, kind: output, shape index: {}]
  %s10 = sld [smem:[#allocation0]]
  $region77: #{tpu_custom_call.1} parent=0
    _
  %s12 = ssub.s32 1, %s10
  %s13 = scalar_select 0, %s12, %s10
  $region1: #{tpu_custom_call.1} parent=0
    #allocation2 [shape = 'u8[262144]{0}', space=vmem, size = 0x40000, scoped, tag = 'input window, operand 0']
    #allocation3 [shape = 's32[2]{0}', space=sflag, size = 0x8, scoped, tag = 'scoped memory for tpu_custom_call.1']
    #allocation4 [shape = 's32[2]{0}', space=sflag, size = 0x8, scoped, tag = 'scoped memory for tpu_custom_call.1']
    #allocation5 [shape = 'u8[262144]{0}', space=vmem, size = 0x40000, scoped, tag = 'output window, operand 0']
    %14 = vsyncpa [#allocation3], 0
    %s15 = scalar_lea.sflag [#allocation3], 1
    %16 = vsyncpa %s15, 0
    %17 = vsyncpa [#allocation4], 0
    %s18 = scalar_lea.sflag [#allocation4], 1
    %19 = vsyncpa %s18, 0
    loop: start=0, step=1, limit=6
    $region2: #{tpu_custom_call.1} parent=1 // loop_pre_header
      _
    $region3: #{tpu_custom_call.1} parent=1 // loop_header
      %s21 = sphi 0, %s25
      %p22 = scmp.ge.s32.totalorder %s21, 6
      %s28 = sphi 0, %s40
      %s29 = sphi 0, %s36
      %s30 = sphi 0, %s28
      %s31 = sphi 0, %s29
      %s32 = sphi 0, %s30
      %s33 = sphi 0, %s31
      %s43 = sphi 0, %s45
      %s46 = sphi 0, %s43
      %s47 = sphi 0, %s46
      %s63 = sphi 0, %s47
      %s67 = sphi 0, %s67
      %s69 = sphi 0, %s67
      %s70 = sphi 0, %s69
      %s84 = sphi 0, %s70
      %s88 = sphi 0, %s88
      %s90 = sphi 0, %s88
      %s91 = sphi 0, %s90
      %s105 = sphi 0, %s91
      %s109 = sphi 0, %s109
      %s111 = sphi 0, %s109
      %s112 = sphi 0, %s111
      %s126 = sphi 0, %s112
      %s130 = sphi 0, %s130
      %s132 = sphi 0, %s130
      %s133 = sphi 0, %s132
      %s147 = sphi 0, %s133
      %s151 = sphi 0, %s151
      %s153 = sphi 0, %s151
      %s154 = sphi 0, %s153
      %s168 = sphi 0, %s154
      %s172 = sphi 0, %s172
      %s174 = sphi 0, %s172
      %s175 = sphi 0, %s174
      %s189 = sphi 0, %s175
      %s193 = sphi 0, %s193
      %s195 = sphi 0, %s193
      %s196 = sphi 0, %s195
      %s210 = sphi 0, %s196
      %s214 = sphi 0, %s214
      %s216 = sphi 0, %s214
      %s217 = sphi 0, %s216
      %s231 = sphi 0, %s217
      %s237 = sphi 0, %s239
      %s240 = sphi 0, %s237
      %s241 = sphi 0, %s240
      %s257 = sphi 0, %s241
    $region4: #{tpu_custom_call.1} parent=1 // loop_header_branch
      %24 = sbr.rel (%p22) target = $region8
    $region5: #{tpu_custom_call.1} parent=1 // loop_body
      %s26 = ssub.s32 %s21, 1
      %s27 = ssub.s32 %s21, 2
      %s34 = sadd.s32 1, %s29
      %p35 = scmp.ge.s32.totalorder %s34, 2
      %s36 = scalar_select %p35, 0, %s34
      %s37 = sadd.s32 1, %s28
      %s38 = scalar_select %p35, %s37, %s28
      %p39 = scmp.ge.s32.totalorder %s38, 2
      %s40 = scalar_select %p39, 0, %s38
      %s41 = ssub.s32 %s28, %s40
      %p42 = scmp.eq.s32.totalorder %s41, 0
      %s44 = sadd.s32 %s43, 1
      %s45 = scalar_select %p42, %s43, %s44
      %p48 = pneg %p42
      %p49 = scmp.eq.s32.totalorder %s21, 3
      %p50 = por %p48, %p49
      %p51 = scmp.ne.s32.totalorder %s43, %s46
      %p52 = scmp.eq.s32.totalorder %s21, 0
      %p53 = por %p51, %p52
      %p54 = scmp.ne.s32.totalorder %s43, %s46
      %p55 = scmp.eq.s32.totalorder %s26, 3
      %p56 = por %p54, %p55
      %p57 = scmp.ne.s32.totalorder %s46, %s47
      %p58 = scmp.eq.s32.totalorder %s26, 0
      %p59 = por %p57, %p58
      %p60 = scmp.ne.s32.totalorder %s46, %s47
      %p61 = scmp.eq.s32.totalorder %s27, 3
      %p62 = por %p60, %p61
      %p64 = scmp.ne.s32.totalorder %s47, %s63
      %p65 = scmp.eq.s32.totalorder %s27, 0
      %p66 = por %p64, %p65
      %s68 = sadd.s32 %s67, 1
      %p71 = scmp.eq.s32.totalorder %s21, 3
      %p72 = scmp.ne.s32.totalorder %s67, %s69
      %p73 = scmp.eq.s32.totalorder %s21, 0
      %p74 = por %p72, %p73
      %p75 = scmp.ne.s32.totalorder %s67, %s69
      %p76 = scmp.eq.s32.totalorder %s26, 3
      %p77 = por %p75, %p76
      %p78 = scmp.ne.s32.totalorder %s69, %s70
      %p79 = scmp.eq.s32.totalorder %s26, 0
      %p80 = por %p78, %p79
      %p81 = scmp.ne.s32.totalorder %s69, %s70
      %p82 = scmp.eq.s32.totalorder %s27, 3
      %p83 = por %p81, %p82
      %p85 = scmp.ne.s32.totalorder %s70, %s84
      %p86 = scmp.eq.s32.totalorder %s27, 0
      %p87 = por %p85, %p86
      %s89 = sadd.s32 %s88, 1
      %p92 = scmp.eq.s32.totalorder %s21, 3
      %p93 = scmp.ne.s32.totalorder %s88, %s90
      %p94 = scmp.eq.s32.totalorder %s21, 0
      %p95 = por %p93, %p94
      %p96 = scmp.ne.s32.totalorder %s88, %s90
      %p97 = scmp.eq.s32.totalorder %s26, 3
      %p98 = por %p96, %p97
      %p99 = scmp.ne.s32.totalorder %s90, %s91
      %p100 = scmp.eq.s32.totalorder %s26, 0
      %p101 = por %p99, %p100
      %p102 = scmp.ne.s32.totalorder %s90, %s91
      %p103 = scmp.eq.s32.totalorder %s27, 3
      %p104 = por %p102, %p103
      %p106 = scmp.ne.s32.totalorder %s91, %s105
      %p107 = scmp.eq.s32.totalorder %s27, 0
      %p108 = por %p106, %p107
      %s110 = sadd.s32 %s109, 1
      %p113 = scmp.eq.s32.totalorder %s21, 3
      %p114 = scmp.ne.s32.totalorder %s109, %s111
      %p115 = scmp.eq.s32.totalorder %s21, 0
      %p116 = por %p114, %p115
      %p117 = scmp.ne.s32.totalorder %s109, %s111
      %p118 = scmp.eq.s32.totalorder %s26, 3
      %p119 = por %p117, %p118
      %p120 = scmp.ne.s32.totalorder %s111, %s112
      %p121 = scmp.eq.s32.totalorder %s26, 0
      %p122 = por %p120, %p121
      %p123 = scmp.ne.s32.totalorder %s111, %s112
      %p124 = scmp.eq.s32.totalorder %s27, 3
      %p125 = por %p123, %p124
      %p127 = scmp.ne.s32.totalorder %s112, %s126
      %p128 = scmp.eq.s32.totalorder %s27, 0
      %p129 = por %p127, %p128
      %s131 = sadd.s32 %s130, 1
      %p134 = scmp.eq.s32.totalorder %s21, 3
      %p135 = scmp.ne.s32.totalorder %s130, %s132
      %p136 = scmp.eq.s32.totalorder %s21, 0
      %p137 = por %p135, %p136
      %p138 = scmp.ne.s32.totalorder %s130, %s132
      %p139 = scmp.eq.s32.totalorder %s26, 3
      %p140 = por %p138, %p139
      %p141 = scmp.ne.s32.totalorder %s132, %s133
      %p142 = scmp.eq.s32.totalorder %s26, 0
      %p143 = por %p141, %p142
      %p144 = scmp.ne.s32.totalorder %s132, %s133
      %p145 = scmp.eq.s32.totalorder %s27, 3
      %p146 = por %p144, %p145
      %p148 = scmp.ne.s32.totalorder %s133, %s147
      %p149 = scmp.eq.s32.totalorder %s27, 0
      %p150 = por %p148, %p149
      %s152 = sadd.s32 %s151, 1
      %p155 = scmp.eq.s32.totalorder %s21, 3
      %p156 = scmp.ne.s32.totalorder %s151, %s153
      %p157 = scmp.eq.s32.totalorder %s21, 0
      %p158 = por %p156, %p157
      %p159 = scmp.ne.s32.totalorder %s151, %s153
      %p160 = scmp.eq.s32.totalorder %s26, 3
      %p161 = por %p159, %p160
      %p162 = scmp.ne.s32.totalorder %s153, %s154
      %p163 = scmp.eq.s32.totalorder %s26, 0
      %p164 = por %p162, %p163
      %p165 = scmp.ne.s32.totalorder %s153, %s154
      %p166 = scmp.eq.s32.totalorder %s27, 3
      %p167 = por %p165, %p166
      %p169 = scmp.ne.s32.totalorder %s154, %s168
      %p170 = scmp.eq.s32.totalorder %s27, 0
      %p171 = por %p169, %p170
      %s173 = sadd.s32 %s172, 1
      %p176 = scmp.eq.s32.totalorder %s21, 3
      %p177 = scmp.ne.s32.totalorder %s172, %s174
      %p178 = scmp.eq.s32.totalorder %s21, 0
      %p179 = por %p177, %p178
      %p180 = scmp.ne.s32.totalorder %s172, %s174
      %p181 = scmp.eq.s32.totalorder %s26, 3
      %p182 = por %p180, %p181
      %p183 = scmp.ne.s32.totalorder %s174, %s175
      %p184 = scmp.eq.s32.totalorder %s26, 0
      %p185 = por %p183, %p184
      %p186 = scmp.ne.s32.totalorder %s174, %s175
      %p187 = scmp.eq.s32.totalorder %s27, 3
      %p188 = por %p186, %p187
      %p190 = scmp.ne.s32.totalorder %s175, %s189
      %p191 = scmp.eq.s32.totalorder %s27, 0
      %p192 = por %p190, %p191
      %s194 = sadd.s32 %s193, 1
      %p197 = scmp.eq.s32.totalorder %s21, 3
      %p198 = scmp.ne.s32.totalorder %s193, %s195
      %p199 = scmp.eq.s32.totalorder %s21, 0
      %p200 = por %p198, %p199
      %p201 = scmp.ne.s32.totalorder %s193, %s195
      %p202 = scmp.eq.s32.totalorder %s26, 3
      %p203 = por %p201, %p202
      %p204 = scmp.ne.s32.totalorder %s195, %s196
      %p205 = scmp.eq.s32.totalorder %s26, 0
      %p206 = por %p204, %p205
      %p207 = scmp.ne.s32.totalorder %s195, %s196
      %p208 = scmp.eq.s32.totalorder %s27, 3
      %p209 = por %p207, %p208
      %p211 = scmp.ne.s32.totalorder %s196, %s210
      %p212 = scmp.eq.s32.totalorder %s27, 0
      %p213 = por %p211, %p212
      %s215 = sadd.s32 %s214, 1
      %p218 = scmp.eq.s32.totalorder %s21, 3
      %p219 = scmp.ne.s32.totalorder %s214, %s216
      %p220 = scmp.eq.s32.totalorder %s21, 0
      %p221 = por %p219, %p220
      %p222 = scmp.ne.s32.totalorder %s214, %s216
      %p223 = scmp.eq.s32.totalorder %s26, 3
      %p224 = por %p222, %p223
      %p225 = scmp.ne.s32.totalorder %s216, %s217
      %p226 = scmp.eq.s32.totalorder %s26, 0
      %p227 = por %p225, %p226
      %p228 = scmp.ne.s32.totalorder %s216, %s217
      %p229 = scmp.eq.s32.totalorder %s27, 3
      %p230 = por %p228, %p229
      %p232 = scmp.ne.s32.totalorder %s217, %s231
      %p233 = scmp.eq.s32.totalorder %s27, 0
      %p234 = por %p232, %p233
      %s235 = ssub.s32 %s28, %s40
      %p236 = scmp.eq.s32.totalorder %s235, 0
      %s238 = sadd.s32 %s237, 1
      %s239 = scalar_select %p236, %s237, %s238
      %p242 = pneg %p236
      %p243 = scmp.eq.s32.totalorder %s21, 3
      %p244 = por %p242, %p243
      %p245 = scmp.ne.s32.totalorder %s237, %s240
      %p246 = scmp.eq.s32.totalorder %s21, 0
      %p247 = por %p245, %p246
      %p248 = scmp.ne.s32.totalorder %s237, %s240
      %p249 = scmp.eq.s32.totalorder %s26, 3
      %p250 = por %p248, %p249
      %p251 = scmp.ne.s32.totalorder %s240, %s241
      %p252 = scmp.eq.s32.totalorder %s26, 0
      %p253 = por %p251, %p252
      %p254 = scmp.ne.s32.totalorder %s240, %s241
      %p255 = scmp.eq.s32.totalorder %s27, 3
      %p256 = por %p254, %p255
      %p258 = scmp.ne.s32.totalorder %s241, %s257
      %p259 = scmp.eq.s32.totalorder %s27, 0
      %p260 = por %p258, %p259
      %p261 = scmp.le.s32.totalorder 1, %s21
      %p262 = scmp.lt.s32.totalorder %s21, 5
      %p263 = pnand %p261, %p262
      %p264 = pneg %p263
      // Predicated region
      $region9: #{tpu_custom_call.1} parent=5 // pred_check
        _
      $region10: #{tpu_custom_call.1} parent=5 // pred_check_branch
        %266 = sbr.rel (%p263) target = $region12
      $region11: #{tpu_custom_call.1} parent=5 // pred_region
        %s267 = ssub.s32 %s21, 1
        // Predicated region
        $region13: #{tpu_custom_call.1} parent=11 // pred_check
          %p268 = pneg %p80
        $region14: #{tpu_custom_call.1} parent=11 // pred_check_branch
          %270 = sbr.rel (%p268) target = $region16
        $region15: #{tpu_custom_call.1} parent=11 // pred_region
          _
        $region16: #{tpu_custom_call.1} parent=11 // pred_fallthru
          _
        // Predicated region
        $region17: #{tpu_custom_call.1} parent=11 // pred_check
          %p271 = pneg %p101
        $region18: #{tpu_custom_call.1} parent=11 // pred_check_branch
          %273 = sbr.rel (%p271) target = $region20
        $region19: #{tpu_custom_call.1} parent=11 // pred_region
          _
        $region20: #{tpu_custom_call.1} parent=11 // pred_fallthru
          _
        // Predicated region
        $region21: #{tpu_custom_call.1} parent=11 // pred_check
          %p274 = pneg %p122
        $region22: #{tpu_custom_call.1} parent=11 // pred_check_branch
          %276 = sbr.rel (%p274) target = $region24
        $region23: #{tpu_custom_call.1} parent=11 // pred_region
          _
        $region24: #{tpu_custom_call.1} parent=11 // pred_fallthru
          _
        // Predicated region
        $region25: #{tpu_custom_call.1} parent=11 // pred_check
          %p277 = pneg %p143
        $region26: #{tpu_custom_call.1} parent=11 // pred_check_branch
          %279 = sbr.rel (%p277) target = $region28
        $region27: #{tpu_custom_call.1} parent=11 // pred_region
          _
        $region28: #{tpu_custom_call.1} parent=11 // pred_fallthru
          _
        // Predicated region
        $region29: #{tpu_custom_call.1} parent=11 // pred_check
          %p280 = pneg %p164
        $region30: #{tpu_custom_call.1} parent=11 // pred_check_branch
          %282 = sbr.rel (%p280) target = $region32
        $region31: #{tpu_custom_call.1} parent=11 // pred_region
          _
        $region32: #{tpu_custom_call.1} parent=11 // pred_fallthru
          _
        // Predicated region
        $region33: #{tpu_custom_call.1} parent=11 // pred_check
          %p283 = pneg %p185
        $region34: #{tpu_custom_call.1} parent=11 // pred_check_branch
          %285 = sbr.rel (%p283) target = $region36
        $region35: #{tpu_custom_call.1} parent=11 // pred_region
          _
        $region36: #{tpu_custom_call.1} parent=11 // pred_fallthru
          _
        // Predicated region
        $region37: #{tpu_custom_call.1} parent=11 // pred_check
          %p286 = pneg %p206
        $region38: #{tpu_custom_call.1} parent=11 // pred_check_branch
          %288 = sbr.rel (%p286) target = $region40
        $region39: #{tpu_custom_call.1} parent=11 // pred_region
          _
        $region40: #{tpu_custom_call.1} parent=11 // pred_fallthru
          _
        // Predicated region
        $region41: #{tpu_custom_call.1} parent=11 // pred_check
          %p289 = pneg %p227
        $region42: #{tpu_custom_call.1} parent=11 // pred_check_branch
          %291 = sbr.rel (%p289) target = $region44
        $region43: #{tpu_custom_call.1} parent=11 // pred_region
          _
        $region44: #{tpu_custom_call.1} parent=11 // pred_fallthru
          _
      $region12: #{tpu_custom_call.1} parent=5 // pred_fallthru
        _
      %p292 = scmp.lt.s32.totalorder %s21, 4
      // Predicated region
      $region45: #{tpu_custom_call.1} parent=5 // pred_check
        %p293 = pneg %p292
      $region46: #{tpu_custom_call.1} parent=5 // pred_check_branch
        %295 = sbr.rel (%p293) target = $region48
      $region47: #{tpu_custom_call.1} parent=5 // pred_region
        // Predicated region
        $region49: #{tpu_custom_call.1} parent=47 // pred_check
          %p296 = pneg %p53
        $region50: #{tpu_custom_call.1} parent=47 // pred_check_branch
          %298 = sbr.rel (%p296) target = $region52
        $region51: #{tpu_custom_call.1} parent=47 // pred_region
          %s299 = sand.u32 %s43, 1
          %s300 = scalar_lea.sflag [#allocation3], %s299
          %s301 = sand.u32 %s43, 1
          %s302 = smul.addr %s301, 256
          %s303 = scalar_lea.vmem [#allocation2], %s302
          %s305 = ssub.s32 4096, 4096
          %306 = vsyncadd %s300, %s305
          %s307 = smul.addr %s28, 32
          %s308 = smul.addr %s307, 128
          %s309 = scalar_lea.hbm %s0, %s308
          %s310 = sshll.u32 %s303, 4
          %s311 = int_to_ptr.vmem [resolvable:$true] %s310
          %316 = dma.hbm_to_vmem [thread:$0]  %s309, 4096, %s311, %s300, 128, 128, 8
        $region52: #{tpu_custom_call.1} parent=47 // pred_fallthru
          _
      $region48: #{tpu_custom_call.1} parent=5 // pred_fallthru
        _
      %p317 = scmp.le.s32.totalorder 1, %s21
      %p318 = scmp.lt.s32.totalorder %s21, 5
      %p319 = pnand %p317, %p318
      %p320 = pneg %p319
      // Predicated region
      $region53: #{tpu_custom_call.1} parent=5 // pred_check
        _
      $region54: #{tpu_custom_call.1} parent=5 // pred_check_branch
        %322 = sbr.rel (%p319) target = $region56
      $region55: #{tpu_custom_call.1} parent=5 // pred_region
        %s323 = ssub.s32 %s21, 1
        %s324 = sand.u32 %s46, 1
        %s325 = scalar_lea.sflag [#allocation3], %s324
        %s326 = sand.u32 %s46, 1
        %s327 = smul.addr %s326, 256
        %s328 = scalar_lea.vmem [#allocation2], %s327
        // Predicated region
        $region57: #{tpu_custom_call.1} parent=55 // pred_check
          %p329 = pneg %p59
        $region58: #{tpu_custom_call.1} parent=55 // pred_check_branch
          %331 = sbr.rel (%p329) target = $region60
        $region59: #{tpu_custom_call.1} parent=55 // pred_region
          %332 = dma.done %s325, 4096
        $region60: #{tpu_custom_call.1} parent=55 // pred_fallthru
          _
        %s333 = sand.u32 %s46, 1
        %s334 = scalar_lea.sflag [#allocation3], %s333
        %s335 = sand.u32 %s46, 1
        %s336 = smul.addr %s335, 256
        %s337 = scalar_lea.vmem [#allocation2], %s336
        %p338 = pneg %p59
        %p339 = pneg %p56
        %p340 = pneg %p80
        %p341 = pneg %p77
        %p342 = pneg %p101
        %p343 = pneg %p98
        %p344 = pneg %p122
        %p345 = pneg %p119
        %p346 = pneg %p143
        %p347 = pneg %p140
        %p348 = pneg %p164
        %p349 = pneg %p161
        %p350 = pneg %p185
        %p351 = pneg %p182
        %p352 = pneg %p206
        %p353 = pneg %p203
        %p354 = pneg %p227
        %p355 = pneg %p224
        %p356 = pneg %p253
        %p357 = pneg %p250
        %s358 = sand.u32 %s240, 1
        %s359 = scalar_lea.sflag [#allocation4], %s358
        %s360 = sand.u32 %s240, 1
        %s361 = smul.addr %s360, 256
        %s362 = scalar_lea.vmem [#allocation5], %s361
        %s364 = smul.u32 %s31, 8
        %s365 = smul.u32 %s364, 16
        %s366 = scalar_lea.vmem %s328, %s365 [#allocation2]
        %v367 = vld [vmem:[%s366] sm:$0xff]
        %v368 = vld [vmem:[%s366 + $0x8] sm:$0xff]
        %v369 = vld [vmem:[%s366 + $0x10] sm:$0xff]
        %v370 = vld [vmem:[%s366 + $0x18] sm:$0xff]
        %v371 = vld [vmem:[%s366 + $0x20] sm:$0xff]
        %v372 = vld [vmem:[%s366 + $0x28] sm:$0xff]
        %v373 = vld [vmem:[%s366 + $0x30] sm:$0xff]
        %v374 = vld [vmem:[%s366 + $0x38] sm:$0xff]
        %v375 = vld [vmem:[%s366 + $0x40] sm:$0xff]
        %v376 = vld [vmem:[%s366 + $0x48] sm:$0xff]
        %v377 = vld [vmem:[%s366 + $0x50] sm:$0xff]
        %v378 = vld [vmem:[%s366 + $0x58] sm:$0xff]
        %v379 = vld [vmem:[%s366 + $0x60] sm:$0xff]
        %v380 = vld [vmem:[%s366 + $0x68] sm:$0xff]
        %v381 = vld [vmem:[%s366 + $0x70] sm:$0xff]
        %v382 = vld [vmem:[%s366 + $0x78] sm:$0xff]
        %v383 = vpack.c.bf16 %v368, %v367
        %v384 = vpack.c.bf16 %v370, %v369
        %v385 = vpack.c.bf16 %v372, %v371
        %v386 = vpack.c.bf16 %v374, %v373
        %v387 = vpack.c.bf16 %v376, %v375
        %v388 = vpack.c.bf16 %v378, %v377
        %v389 = vpack.c.bf16 %v380, %v379
        %v390 = vpack.c.bf16 %v382, %v381
        %v391 = vld [vmem:[%s1] sm:$0xf]
        %v392 = vld [vmem:[%s1 + $0x4] sm:$0xf]
        %v393 = vld [vmem:[%s1 + $0x8] sm:$0xf]
        %v394 = vld [vmem:[%s1 + $0xc] sm:$0xf]
        %v395 = vld [vmem:[%s1 + $0x10] sm:$0xf]
        %v396 = vld [vmem:[%s1 + $0x14] sm:$0xf]
        %v397 = vld [vmem:[%s1 + $0x18] sm:$0xf]
        %v398 = vld [vmem:[%s1 + $0x1c] sm:$0xf]
        %v399 = vld [vmem:[%s1 + $0x20] sm:$0xf]
        %v400 = vld [vmem:[%s1 + $0x24] sm:$0xf]
        %v401 = vld [vmem:[%s1 + $0x28] sm:$0xf]
        %v402 = vld [vmem:[%s1 + $0x2c] sm:$0xf]
        %v403 = vld [vmem:[%s1 + $0x30] sm:$0xf]
        %v404 = vld [vmem:[%s1 + $0x34] sm:$0xf]
        %v405 = vld [vmem:[%s1 + $0x38] sm:$0xf]
        %v406 = vld [vmem:[%s1 + $0x3c] sm:$0xf]
        %v407 = vld [vmem:[%s2] sm:$0x1]
        %v409 = vlaneseq
        %v410 = vshrl.u32 %v409, 7
        %v411 = vsub.s32 0, %v410
        %v412 = vrot.slane %v407, %v411
        %v430 = vunpack.c.l.b16 %v391
        %v431 = vunpack.c.l.b16 %v392
        %v432 = vunpack.c.l.b16 %v393
        %v433 = vunpack.c.l.b16 %v394
        %v434 = vunpack.c.l.b16 %v395
        %v435 = vunpack.c.l.b16 %v396
        %v436 = vunpack.c.l.b16 %v397
        %v437 = vunpack.c.l.b16 %v398
        %v438 = vunpack.c.l.b16 %v399
        %v439 = vunpack.c.l.b16 %v400
        %v440 = vunpack.c.l.b16 %v401
        %v441 = vunpack.c.l.b16 %v402
        %v442 = vunpack.c.l.b16 %v403
        %v443 = vunpack.c.l.b16 %v404
        %v444 = vunpack.c.l.b16 %v405
        %v445 = vunpack.c.l.b16 %v406
        %v446 = vpack.c.b16 %v431, %v430
        %v447 = vpack.c.b16 %v433, %v432
        %v448 = vpack.c.b16 %v435, %v434
        %v449 = vpack.c.b16 %v437, %v436
        %v450 = vpack.c.b16 %v439, %v438
        %v451 = vpack.c.b16 %v441, %v440
        %v452 = vpack.c.b16 %v443, %v442
        %v453 = vpack.c.b16 %v445, %v444
        %462 = vmatprep.subr.bf16.mxu0 0
        %463 = vmatpush1.bf16.msra.mxu0 %v446
        %464 = vmatprep.subr.bf16.mxu0 0
        %465 = vmatpush1.bf16.msra.mxu0 %v447
        %466 = vmatprep.subr.bf16.mxu0 0
        %467 = vmatpush1.bf16.msra.mxu0 %v448
        %468 = vmatprep.subr.bf16.mxu0 0
        %469 = vmatpush1.bf16.msra.mxu0 %v449
        %470 = vmatprep.subr.bf16.mxu0 0
        %471 = vmatpush1.bf16.msra.mxu0 %v450
        %472 = vmatprep.subr.bf16.mxu0 0
        %473 = vmatpush1.bf16.msra.mxu0 %v451
        %474 = vmatprep.subr.bf16.mxu0 0
        %475 = vmatpush1.bf16.msra.mxu0 %v452
        %476 = vmatprep.subr.bf16.mxu0 0
        %477 = vmatpush1.bf16.msra.mxu0 %v453
        %478 = vmatprep.subr.bf16.mxu0 0
        %479 = vmatpush1.bf16.msra.mxu0 0
        %480 = vmatprep.subr.bf16.mxu0 0
        %481 = vmatpush1.bf16.msra.mxu0 0
        %482 = vmatprep.subr.bf16.mxu0 0
        %483 = vmatpush1.bf16.msra.mxu0 0
        %484 = vmatprep.subr.bf16.mxu0 0
        %485 = vmatpush1.bf16.msra.mxu0 0
        %486 = vmatprep.subr.bf16.mxu0 0
        %487 = vmatpush1.bf16.msra.mxu0 0
        %488 = vmatprep.subr.bf16.mxu0 0
        %489 = vmatpush1.bf16.msra.mxu0 0
        %490 = vmatprep.subr.bf16.mxu0 0
        %491 = vmatpush1.bf16.msra.mxu0 0
        %492 = vmatprep.subr.bf16.mxu0 0
        %493 = vmatpush1.bf16.msra.mxu0 0
        %494 = vmatprep.mubr.bf16.mxu0 0
        %495 = vmatmul.mubr.bf16.gmra.mrb[0].mxu0 %v383
        %v496 = vpop.f32.mrb[0].mxu0
        %v497 = vadd.f32 %v412, %v496
        %v498 = vpop.f32.mrb[0].mxu0
        %v499 = vpop.f32.mrb[0].mxu0
        %v500 = vadd.f32 %v412, %v499
        %v501 = vpop.f32.mrb[0].mxu0
        %502 = vmatprep.mubr.bf16.mxu0 0
        %503 = vmatmul.mubr.bf16.gmra.mrb[0].mxu0 %v384
        %v504 = vpop.f32.mrb[0].mxu0
        %v505 = vadd.f32 %v412, %v504
        %v506 = vpop.f32.mrb[0].mxu0
        %v507 = vpop.f32.mrb[0].mxu0
        %v508 = vadd.f32 %v412, %v507
        %v509 = vpop.f32.mrb[0].mxu0
        %510 = vmatprep.mubr.bf16.mxu0 0
        %511 = vmatmul.mubr.bf16.gmra.mrb[0].mxu0 %v385
        %v512 = vpop.f32.mrb[0].mxu0
        %v513 = vadd.f32 %v412, %v512
        %v514 = vpop.f32.mrb[0].mxu0
        %v515 = vpop.f32.mrb[0].mxu0
        %v516 = vadd.f32 %v412, %v515
        %v517 = vpop.f32.mrb[0].mxu0
        %518 = vmatprep.mubr.bf16.mxu0 0
        %519 = vmatmul.mubr.bf16.gmra.mrb[0].mxu0 %v386
        %v520 = vpop.f32.mrb[0].mxu0
        %v521 = vadd.f32 %v412, %v520
        %v522 = vpop.f32.mrb[0].mxu0
        %v523 = vpop.f32.mrb[0].mxu0
        %v524 = vadd.f32 %v412, %v523
        %v525 = vpop.f32.mrb[0].mxu0
        %526 = vmatprep.mubr.bf16.mxu0 0
        %527 = vmatmul.mubr.bf16.gmra.mrb[0].mxu0 %v387
        %v528 = vpop.f32.mrb[0].mxu0
        %v529 = vadd.f32 %v412, %v528
        %v530 = vpop.f32.mrb[0].mxu0
        %v531 = vpop.f32.mrb[0].mxu0
        %v532 = vadd.f32 %v412, %v531
        %v533 = vpop.f32.mrb[0].mxu0
        %534 = vmatprep.mubr.bf16.mxu0 0
        %535 = vmatmul.mubr.bf16.gmra.mrb[0].mxu0 %v388
        %v536 = vpop.f32.mrb[0].mxu0
        %v537 = vadd.f32 %v412, %v536
        %v538 = vpop.f32.mrb[0].mxu0
        %v539 = vpop.f32.mrb[0].mxu0
        %v540 = vadd.f32 %v412, %v539
        %v541 = vpop.f32.mrb[0].mxu0
        %542 = vmatprep.mubr.bf16.mxu0 0
        %543 = vmatmul.mubr.bf16.gmra.mrb[0].mxu0 %v389
        %v544 = vpop.f32.mrb[0].mxu0
        %v545 = vadd.f32 %v412, %v544
        %v546 = vpop.f32.mrb[0].mxu0
        %v547 = vpop.f32.mrb[0].mxu0
        %v548 = vadd.f32 %v412, %v547
        %v549 = vpop.f32.mrb[0].mxu0
        %550 = vmatprep.mubr.bf16.mxu0 0
        %551 = vmatmul.mubr.bf16.gmra.mrb[0].mxu0 %v390
        %v552 = vpop.f32.mrb[0].mxu0
        %v553 = vadd.f32 %v412, %v552
        %v554 = vpop.f32.mrb[0].mxu0
        %v555 = vpop.f32.mrb[0].mxu0
        %v556 = vadd.f32 %v412, %v555
        %v557 = vpop.f32.mrb[0].mxu0
        %558 = vdwg.mxu0
        %v559 = vmax.f32 %v497, 0.0
        %v560 = vmax.f32 %v500, 0.0
        %v561 = vmax.f32 %v505, 0.0
        %v562 = vmax.f32 %v508, 0.0
        %v563 = vmax.f32 %v513, 0.0
        %v564 = vmax.f32 %v516, 0.0
        %v565 = vmax.f32 %v521, 0.0
        %v566 = vmax.f32 %v524, 0.0
        %v567 = vmax.f32 %v529, 0.0
        %v568 = vmax.f32 %v532, 0.0
        %v569 = vmax.f32 %v537, 0.0
        %v570 = vmax.f32 %v540, 0.0
        %v571 = vmax.f32 %v545, 0.0
        %v572 = vmax.f32 %v548, 0.0
        %v573 = vmax.f32 %v553, 0.0
        %v574 = vmax.f32 %v556, 0.0
        %s575 = ssub.s32 %s364, 1
        %p576 = scmp.gt.s32.totalorder %s575, 0
        %s577 = scalar_select %p576, %s575, 0
        %s578 = smul.u32 %s577, 16
        %s579 = scalar_lea.vmem %s328, %s578 [#allocation2]
        %v580 = vld [vmem:[%s579] sm:$0xff]
        %v581 = vld [vmem:[%s579 + $0x8] sm:$0xff]
        %v582 = vpack.c.bf16 %v581, %v580
        %583 = vmatprep.subr.bf16.mxu0 0
        %584 = vmatpush1.bf16.msra.mxu0 %v446
        %585 = vmatprep.subr.bf16.mxu0 0
        %586 = vmatpush1.bf16.msra.mxu0 %v447
        %587 = vmatprep.subr.bf16.mxu0 0
        %588 = vmatpush1.bf16.msra.mxu0 %v448
        %589 = vmatprep.subr.bf16.mxu0 0
        %590 = vmatpush1.bf16.msra.mxu0 %v449
        %591 = vmatprep.subr.bf16.mxu0 0
        %592 = vmatpush1.bf16.msra.mxu0 %v450
        %593 = vmatprep.subr.bf16.mxu0 0
        %594 = vmatpush1.bf16.msra.mxu0 %v451
        %595 = vmatprep.subr.bf16.mxu0 0
        %596 = vmatpush1.bf16.msra.mxu0 %v452
        %597 = vmatprep.subr.bf16.mxu0 0
        %598 = vmatpush1.bf16.msra.mxu0 %v453
        %599 = vmatprep.subr.bf16.mxu0 0
        %600 = vmatpush1.bf16.msra.mxu0 0
        %601 = vmatprep.subr.bf16.mxu0 0
        %602 = vmatpush1.bf16.msra.mxu0 0
        %603 = vmatprep.subr.bf16.mxu0 0
        %604 = vmatpush1.bf16.msra.mxu0 0
        %605 = vmatprep.subr.bf16.mxu0 0
        %606 = vmatpush1.bf16.msra.mxu0 0
        %607 = vmatprep.subr.bf16.mxu0 0
        %608 = vmatpush1.bf16.msra.mxu0 0
        %609 = vmatprep.subr.bf16.mxu0 0
        %610 = vmatpush1.bf16.msra.mxu0 0
        %611 = vmatprep.subr.bf16.mxu0 0
        %612 = vmatpush1.bf16.msra.mxu0 0
        %613 = vmatprep.subr.bf16.mxu0 0
        %614 = vmatpush1.bf16.msra.mxu0 0
        %615 = vmatprep.mubr.bf16.mxu0 0
        %616 = vmatmul.mubr.bf16.gmra.mrb[0].mxu0 %v582
        %v617 = vpop.f32.mrb[0].mxu0
        %v618 = vadd.f32 %v412, %v617
        %v619 = vpop.f32.mrb[0].mxu0
        %v620 = vpop.f32.mrb[0].mxu0
        %v621 = vadd.f32 %v412, %v620
        %v622 = vpop.f32.mrb[0].mxu0
        %623 = vdwg.mxu0
        %v624 = vmax.f32 %v618, 0.0
        %v625 = vmax.f32 %v621, 0.0
        %s626 = sadd.s32 %s364, 8
        %p627 = scmp.lt.s32.totalorder %s626, 15
        %s628 = scalar_select %p627, %s626, 15
        %s629 = smul.u32 %s628, 16
        %s630 = scalar_lea.vmem %s328, %s629 [#allocation2]
        %v631 = vld [vmem:[%s630] sm:$0xff]
        %v632 = vld [vmem:[%s630 + $0x8] sm:$0xff]
        %v633 = vpack.c.bf16 %v632, %v631
        %634 = vmatprep.subr.bf16.mxu0 0
        %635 = vmatpush1.bf16.msra.mxu0 %v446
        %636 = vmatprep.subr.bf16.mxu0 0
        %637 = vmatpush1.bf16.msra.mxu0 %v447
        %638 = vmatprep.subr.bf16.mxu0 0
        %639 = vmatpush1.bf16.msra.mxu0 %v448
        %640 = vmatprep.subr.bf16.mxu0 0
        %641 = vmatpush1.bf16.msra.mxu0 %v449
        %642 = vmatprep.subr.bf16.mxu0 0
        %643 = vmatpush1.bf16.msra.mxu0 %v450
        %644 = vmatprep.subr.bf16.mxu0 0
        %645 = vmatpush1.bf16.msra.mxu0 %v451
        %646 = vmatprep.subr.bf16.mxu0 0
        %647 = vmatpush1.bf16.msra.mxu0 %v452
        %648 = vmatprep.subr.bf16.mxu0 0
        %649 = vmatpush1.bf16.msra.mxu0 %v453
        %650 = vmatprep.subr.bf16.mxu0 0
        %651 = vmatpush1.bf16.msra.mxu0 0
        %652 = vmatprep.subr.bf16.mxu0 0
        %653 = vmatpush1.bf16.msra.mxu0 0
        %654 = vmatprep.subr.bf16.mxu0 0
        %655 = vmatpush1.bf16.msra.mxu0 0
        %656 = vmatprep.subr.bf16.mxu0 0
        %657 = vmatpush1.bf16.msra.mxu0 0
        %658 = vmatprep.subr.bf16.mxu0 0
        %659 = vmatpush1.bf16.msra.mxu0 0
        %660 = vmatprep.subr.bf16.mxu0 0
        %661 = vmatpush1.bf16.msra.mxu0 0
        %662 = vmatprep.subr.bf16.mxu0 0
        %663 = vmatpush1.bf16.msra.mxu0 0
        %664 = vmatprep.subr.bf16.mxu0 0
        %665 = vmatpush1.bf16.msra.mxu0 0
        %666 = vmatprep.mubr.bf16.mxu0 0
        %667 = vmatmul.mubr.bf16.gmra.mrb[0].mxu0 %v633
        %v668 = vpop.f32.mrb[0].mxu0
        %v669 = vadd.f32 %v412, %v668
        %v670 = vpop.f32.mrb[0].mxu0
        %v671 = vpop.f32.mrb[0].mxu0
        %v672 = vadd.f32 %v412, %v671
        %v673 = vpop.f32.mrb[0].mxu0
        %674 = vdwg.mxu0
        %v675 = vmax.f32 %v669, 0.0
        %v676 = vmax.f32 %v672, 0.0
        %p677 = scmp.gt.s32.totalorder %s31, 0
        %s678 = scalar_select %p677, 1, 0
        %v679 = vstv %s678
        %vm680 = vcmp.eq.s32.totalorder %v679, 1
        %v681 = vsel %vm680, %v624, 0.0
        %v682 = vsel %vm680, %v625, 0.0
        %p683 = scmp.lt.s32.totalorder %s31, 1
        %s684 = scalar_select %p683, 1, 0
        %v685 = vstv %s684
        %vm686 = vcmp.eq.s32.totalorder %v685, 1
        %v687 = vsel %vm686, %v675, 0.0
        %v688 = vsel %vm686, %v676, 0.0
        %vm709 = vcmask 1040384
        %v710 = vrot.slane %v681, 7
        %v711 = vrot.slane %v682, 7
        %v712 = vsel %vm709, %v710, %v711
        %v713 = vrot.slane %v559, 7
        %v714 = vrot.slane %v560, 7
        %v715 = vsel %vm709, %v713, %v714
        %v716 = vrot.slane %v561, 7
        %v717 = vrot.slane %v562, 7
        %v718 = vsel %vm709, %v716, %v717
        %v719 = vrot.slane %v563, 7
        %v720 = vrot.slane %v564, 7
        %v721 = vsel %vm709, %v719, %v720
        %v722 = vrot.slane %v565, 7
        %v723 = vrot.slane %v566, 7
        %v724 = vsel %vm709, %v722, %v723
        %v725 = vrot.slane %v567, 7
        %v726 = vrot.slane %v568, 7
        %v727 = vsel %vm709, %v725, %v726
        %v728 = vrot.slane %v569, 7
        %v729 = vrot.slane %v570, 7
        %v730 = vsel %vm709, %v728, %v729
        %v731 = vrot.slane %v571, 7
        %v732 = vrot.slane %v572, 7
        %v733 = vsel %vm709, %v731, %v732
        %v734 = vrot.slane %v573, 7
        %v735 = vrot.slane %v574, 7
        %v736 = vsel %vm709, %v734, %v735
        %v737 = vrot.slane %v687, 7
        %v738 = vrot.slane %v688, 7
        %v739 = vsel %vm709, %v737, %v738
        %v768 = vsel %vm709, 0.0, %v710
        %v769 = vsel %vm709, 0.0, %v713
        %v770 = vsel %vm709, 0.0, %v716
        %v771 = vsel %vm709, 0.0, %v719
        %v772 = vsel %vm709, 0.0, %v722
        %v773 = vsel %vm709, 0.0, %v725
        %v774 = vsel %vm709, 0.0, %v728
        %v775 = vsel %vm709, 0.0, %v731
        %v776 = vsel %vm709, 0.0, %v734
        %v777 = vsel %vm709, 0.0, %v737
        %v778 = vsel %vm709, %v711, 0.0
        %v779 = vsel %vm709, %v714, 0.0
        %v780 = vsel %vm709, %v717, 0.0
        %v781 = vsel %vm709, %v720, 0.0
        %v782 = vsel %vm709, %v723, 0.0
        %v783 = vsel %vm709, %v726, 0.0
        %v784 = vsel %vm709, %v729, 0.0
        %v785 = vsel %vm709, %v732, 0.0
        %v786 = vsel %vm709, %v735, 0.0
        %v787 = vsel %vm709, %v738, 0.0
        %vm804 = vcmask 1046528
        %v805 = vrot.slane %v768, 1
        %v806 = vrot.slane %v712, 1
        %v807 = vsel %vm804, %v805, %v806
        %v808 = vrot.slane %v778, 1
        %v809 = vsel %vm804, %v806, %v808
        %v810 = vrot.slane %v769, 1
        %v811 = vrot.slane %v715, 1
        %v812 = vsel %vm804, %v810, %v811
        %v813 = vrot.slane %v779, 1
        %v814 = vsel %vm804, %v811, %v813
        %v815 = vrot.slane %v770, 1
        %v816 = vrot.slane %v718, 1
        %v817 = vsel %vm804, %v815, %v816
        %v818 = vrot.slane %v780, 1
        %v819 = vsel %vm804, %v816, %v818
        %v820 = vrot.slane %v771, 1
        %v821 = vrot.slane %v721, 1
        %v822 = vsel %vm804, %v820, %v821
        %v823 = vrot.slane %v781, 1
        %v824 = vsel %vm804, %v821, %v823
        %v825 = vrot.slane %v772, 1
        %v826 = vrot.slane %v724, 1
        %v827 = vsel %vm804, %v825, %v826
        %v828 = vrot.slane %v782, 1
        %v829 = vsel %vm804, %v826, %v828
        %v830 = vrot.slane %v773, 1
        %v831 = vrot.slane %v727, 1
        %v832 = vsel %vm804, %v830, %v831
        %v833 = vrot.slane %v783, 1
        %v834 = vsel %vm804, %v831, %v833
        %v835 = vrot.slane %v774, 1
        %v836 = vrot.slane %v730, 1
        %v837 = vsel %vm804, %v835, %v836
        %v838 = vrot.slane %v784, 1
        %v839 = vsel %vm804, %v836, %v838
        %v840 = vrot.slane %v775, 1
        %v841 = vrot.slane %v733, 1
        %v842 = vsel %vm804, %v840, %v841
        %v843 = vrot.slane %v785, 1
        %v844 = vsel %vm804, %v841, %v843
        %845 = vrot.lane.b32.xlu0 %v807, 32
        %v846 = vpop.permute.xlu0 %845
        %847 = vrot.lane.b32.xlu0 %v809, 32
        %v848 = vpop.permute.xlu0 %847
        %849 = vrot.lane.b32.xlu0 %v812, 32
        %v850 = vpop.permute.xlu0 %849
        %851 = vrot.lane.b32.xlu0 %v814, 32
        %v852 = vpop.permute.xlu0 %851
        %853 = vrot.lane.b32.xlu0 %v817, 32
        %v854 = vpop.permute.xlu0 %853
        %855 = vrot.lane.b32.xlu0 %v819, 32
        %v856 = vpop.permute.xlu0 %855
        %857 = vrot.lane.b32.xlu0 %v822, 32
        %v858 = vpop.permute.xlu0 %857
        %859 = vrot.lane.b32.xlu0 %v824, 32
        %v860 = vpop.permute.xlu0 %859
        %861 = vrot.lane.b32.xlu0 %v827, 32
        %v862 = vpop.permute.xlu0 %861
        %863 = vrot.lane.b32.xlu0 %v829, 32
        %v864 = vpop.permute.xlu0 %863
        %865 = vrot.lane.b32.xlu0 %v832, 32
        %v866 = vpop.permute.xlu0 %865
        %867 = vrot.lane.b32.xlu0 %v834, 32
        %v868 = vpop.permute.xlu0 %867
        %869 = vrot.lane.b32.xlu0 %v837, 32
        %v870 = vpop.permute.xlu0 %869
        %871 = vrot.lane.b32.xlu0 %v839, 32
        %v872 = vpop.permute.xlu0 %871
        %873 = vrot.lane.b32.xlu0 %v842, 32
        %v874 = vpop.permute.xlu0 %873
        %875 = vrot.lane.b32.xlu0 %v844, 32
        %v876 = vpop.permute.xlu0 %875
        %vm893 = vcmask 1045504
        %v894 = vrot.slane %v768, 2
        %v895 = vrot.slane %v712, 2
        %v896 = vsel %vm893, %v894, %v895
        %v897 = vrot.slane %v778, 2
        %v898 = vsel %vm893, %v895, %v897
        %v899 = vrot.slane %v769, 2
        %v900 = vrot.slane %v715, 2
        %v901 = vsel %vm893, %v899, %v900
        %v902 = vrot.slane %v779, 2
        %v903 = vsel %vm893, %v900, %v902
        %v904 = vrot.slane %v770, 2
        %v905 = vrot.slane %v718, 2
        %v906 = vsel %vm893, %v904, %v905
        %v907 = vrot.slane %v780, 2
        %v908 = vsel %vm893, %v905, %v907
        %v909 = vrot.slane %v771, 2
        %v910 = vrot.slane %v721, 2
        %v911 = vsel %vm893, %v909, %v910
        %v912 = vrot.slane %v781, 2
        %v913 = vsel %vm893, %v910, %v912
        %v914 = vrot.slane %v772, 2
        %v915 = vrot.slane %v724, 2
        %v916 = vsel %vm893, %v914, %v915
        %v917 = vrot.slane %v782, 2
        %v918 = vsel %vm893, %v915, %v917
        %v919 = vrot.slane %v773, 2
        %v920 = vrot.slane %v727, 2
        %v921 = vsel %vm893, %v919, %v920
        %v922 = vrot.slane %v783, 2
        %v923 = vsel %vm893, %v920, %v922
        %v924 = vrot.slane %v774, 2
        %v925 = vrot.slane %v730, 2
        %v926 = vsel %vm893, %v924, %v925
        %v927 = vrot.slane %v784, 2
        %v928 = vsel %vm893, %v925, %v927
        %v929 = vrot.slane %v775, 2
        %v930 = vrot.slane %v733, 2
        %v931 = vsel %vm893, %v929, %v930
        %v932 = vrot.slane %v785, 2
        %v933 = vsel %vm893, %v930, %v932
        %934 = vrot.lane.b32.xlu0 %v896, 64
        %v935 = vpop.permute.xlu0 %934
        %936 = vrot.lane.b32.xlu0 %v898, 64
        %v937 = vpop.permute.xlu0 %936
        %938 = vrot.lane.b32.xlu0 %v901, 64
        %v939 = vpop.permute.xlu0 %938
        %940 = vrot.lane.b32.xlu0 %v903, 64
        %v941 = vpop.permute.xlu0 %940
        %942 = vrot.lane.b32.xlu0 %v906, 64
        %v943 = vpop.permute.xlu0 %942
        %944 = vrot.lane.b32.xlu0 %v908, 64
        %v945 = vpop.permute.xlu0 %944
        %946 = vrot.lane.b32.xlu0 %v911, 64
        %v947 = vpop.permute.xlu0 %946
        %948 = vrot.lane.b32.xlu0 %v913, 64
        %v949 = vpop.permute.xlu0 %948
        %950 = vrot.lane.b32.xlu0 %v916, 64
        %v951 = vpop.permute.xlu0 %950
        %952 = vrot.lane.b32.xlu0 %v918, 64
        %v953 = vpop.permute.xlu0 %952
        %954 = vrot.lane.b32.xlu0 %v921, 64
        %v955 = vpop.permute.xlu0 %954
        %956 = vrot.lane.b32.xlu0 %v923, 64
        %v957 = vpop.permute.xlu0 %956
        %958 = vrot.lane.b32.xlu0 %v926, 64
        %v959 = vpop.permute.xlu0 %958
        %960 = vrot.lane.b32.xlu0 %v928, 64
        %v961 = vpop.permute.xlu0 %960
        %962 = vrot.lane.b32.xlu0 %v931, 64
        %v963 = vpop.permute.xlu0 %962
        %964 = vrot.lane.b32.xlu0 %v933, 64
        %v965 = vpop.permute.xlu0 %964
        %983 = vrot.lane.b32.xlu0 %v769, 96
        %v984 = vpop.permute.xlu0 %983
        %985 = vrot.lane.b32.xlu0 %v715, 96
        %v986 = vpop.permute.xlu0 %985
        %987 = vrot.lane.b32.xlu0 %v770, 96
        %v988 = vpop.permute.xlu0 %987
        %989 = vrot.lane.b32.xlu0 %v718, 96
        %v990 = vpop.permute.xlu0 %989
        %991 = vrot.lane.b32.xlu0 %v771, 96
        %v992 = vpop.permute.xlu0 %991
        %993 = vrot.lane.b32.xlu0 %v721, 96
        %v994 = vpop.permute.xlu0 %993
        %995 = vrot.lane.b32.xlu0 %v772, 96
        %v996 = vpop.permute.xlu0 %995
        %997 = vrot.lane.b32.xlu0 %v724, 96
        %v998 = vpop.permute.xlu0 %997
        %999 = vrot.lane.b32.xlu0 %v773, 96
        %v1000 = vpop.permute.xlu0 %999
        %1001 = vrot.lane.b32.xlu0 %v727, 96
        %v1002 = vpop.permute.xlu0 %1001
        %1003 = vrot.lane.b32.xlu0 %v774, 96
        %v1004 = vpop.permute.xlu0 %1003
        %1005 = vrot.lane.b32.xlu0 %v730, 96
        %v1006 = vpop.permute.xlu0 %1005
        %1007 = vrot.lane.b32.xlu0 %v775, 96
        %v1008 = vpop.permute.xlu0 %1007
        %1009 = vrot.lane.b32.xlu0 %v733, 96
        %v1010 = vpop.permute.xlu0 %1009
        %1011 = vrot.lane.b32.xlu0 %v776, 96
        %v1012 = vpop.permute.xlu0 %1011
        %1013 = vrot.lane.b32.xlu0 %v736, 96
        %v1014 = vpop.permute.xlu0 %1013
        %v1032 = vrot.slane %v776, 1
        %v1033 = vrot.slane %v736, 1
        %v1034 = vsel %vm804, %v1032, %v1033
        %v1035 = vrot.slane %v786, 1
        %v1036 = vsel %vm804, %v1033, %v1035
        %v1053 = vrot.slane %v776, 2
        %v1054 = vrot.slane %v736, 2
        %v1055 = vsel %vm893, %v1053, %v1054
        %v1056 = vrot.slane %v786, 2
        %v1057 = vsel %vm893, %v1054, %v1056
        %1058 = vrot.lane.b32.xlu0 %v901, 32
        %v1059 = vpop.permute.xlu0 %1058
        %1060 = vrot.lane.b32.xlu0 %v903, 32
        %v1061 = vpop.permute.xlu0 %1060
        %1062 = vrot.lane.b32.xlu0 %v906, 32
        %v1063 = vpop.permute.xlu0 %1062
        %1064 = vrot.lane.b32.xlu0 %v908, 32
        %v1065 = vpop.permute.xlu0 %1064
        %1066 = vrot.lane.b32.xlu0 %v911, 32
        %v1067 = vpop.permute.xlu0 %1066
        %1068 = vrot.lane.b32.xlu0 %v913, 32
        %v1069 = vpop.permute.xlu0 %1068
        %1070 = vrot.lane.b32.xlu0 %v916, 32
        %v1071 = vpop.permute.xlu0 %1070
        %1072 = vrot.lane.b32.xlu0 %v918, 32
        %v1073 = vpop.permute.xlu0 %1072
        %1074 = vrot.lane.b32.xlu0 %v921, 32
        %v1075 = vpop.permute.xlu0 %1074
        %1076 = vrot.lane.b32.xlu0 %v923, 32
        %v1077 = vpop.permute.xlu0 %1076
        %1078 = vrot.lane.b32.xlu0 %v926, 32
        %v1079 = vpop.permute.xlu0 %1078
        %1080 = vrot.lane.b32.xlu0 %v928, 32
        %v1081 = vpop.permute.xlu0 %1080
        %1082 = vrot.lane.b32.xlu0 %v931, 32
        %v1083 = vpop.permute.xlu0 %1082
        %1084 = vrot.lane.b32.xlu0 %v933, 32
        %v1085 = vpop.permute.xlu0 %1084
        %1086 = vrot.lane.b32.xlu0 %v1055, 32
        %v1087 = vpop.permute.xlu0 %1086
        %1088 = vrot.lane.b32.xlu0 %v1057, 32
        %v1089 = vpop.permute.xlu0 %1088
        %1107 = vrot.lane.b32.xlu0 %v770, 64
        %v1108 = vpop.permute.xlu0 %1107
        %1109 = vrot.lane.b32.xlu0 %v718, 64
        %v1110 = vpop.permute.xlu0 %1109
        %1111 = vrot.lane.b32.xlu0 %v771, 64
        %v1112 = vpop.permute.xlu0 %1111
        %1113 = vrot.lane.b32.xlu0 %v721, 64
        %v1114 = vpop.permute.xlu0 %1113
        %1115 = vrot.lane.b32.xlu0 %v772, 64
        %v1116 = vpop.permute.xlu0 %1115
        %1117 = vrot.lane.b32.xlu0 %v724, 64
        %v1118 = vpop.permute.xlu0 %1117
        %1119 = vrot.lane.b32.xlu0 %v773, 64
        %v1120 = vpop.permute.xlu0 %1119
        %1121 = vrot.lane.b32.xlu0 %v727, 64
        %v1122 = vpop.permute.xlu0 %1121
        %1123 = vrot.lane.b32.xlu0 %v774, 64
        %v1124 = vpop.permute.xlu0 %1123
        %1125 = vrot.lane.b32.xlu0 %v730, 64
        %v1126 = vpop.permute.xlu0 %1125
        %1127 = vrot.lane.b32.xlu0 %v775, 64
        %v1128 = vpop.permute.xlu0 %1127
        %1129 = vrot.lane.b32.xlu0 %v733, 64
        %v1130 = vpop.permute.xlu0 %1129
        %1131 = vrot.lane.b32.xlu0 %v776, 64
        %v1132 = vpop.permute.xlu0 %1131
        %1133 = vrot.lane.b32.xlu0 %v736, 64
        %v1134 = vpop.permute.xlu0 %1133
        %1135 = vrot.lane.b32.xlu0 %v777, 64
        %v1136 = vpop.permute.xlu0 %1135
        %1137 = vrot.lane.b32.xlu0 %v739, 64
        %v1138 = vpop.permute.xlu0 %1137
        %v1156 = vrot.slane %v777, 1
        %v1157 = vrot.slane %v739, 1
        %v1158 = vsel %vm804, %v1156, %v1157
        %v1159 = vrot.slane %v787, 1
        %v1160 = vsel %vm804, %v1157, %v1159
        %1161 = vrot.lane.b32.xlu0 %v817, 96
        %v1162 = vpop.permute.xlu0 %1161
        %1163 = vrot.lane.b32.xlu0 %v819, 96
        %v1164 = vpop.permute.xlu0 %1163
        %1165 = vrot.lane.b32.xlu0 %v822, 96
        %v1166 = vpop.permute.xlu0 %1165
        %1167 = vrot.lane.b32.xlu0 %v824, 96
        %v1168 = vpop.permute.xlu0 %1167
        %1169 = vrot.lane.b32.xlu0 %v827, 96
        %v1170 = vpop.permute.xlu0 %1169
        %1171 = vrot.lane.b32.xlu0 %v829, 96
        %v1172 = vpop.permute.xlu0 %1171
        %1173 = vrot.lane.b32.xlu0 %v832, 96
        %v1174 = vpop.permute.xlu0 %1173
        %1175 = vrot.lane.b32.xlu0 %v834, 96
        %v1176 = vpop.permute.xlu0 %1175
        %1177 = vrot.lane.b32.xlu0 %v837, 96
        %v1178 = vpop.permute.xlu0 %1177
        %1179 = vrot.lane.b32.xlu0 %v839, 96
        %v1180 = vpop.permute.xlu0 %1179
        %1181 = vrot.lane.b32.xlu0 %v842, 96
        %v1182 = vpop.permute.xlu0 %1181
        %1183 = vrot.lane.b32.xlu0 %v844, 96
        %v1184 = vpop.permute.xlu0 %1183
        %1185 = vrot.lane.b32.xlu0 %v1034, 96
        %v1186 = vpop.permute.xlu0 %1185
        %1187 = vrot.lane.b32.xlu0 %v1036, 96
        %v1188 = vpop.permute.xlu0 %1187
        %1189 = vrot.lane.b32.xlu0 %v1158, 96
        %v1190 = vpop.permute.xlu0 %1189
        %1191 = vrot.lane.b32.xlu0 %v1160, 96
        %v1192 = vpop.permute.xlu0 %1191
        %v1209 = vrot.slane %v777, 2
        %v1210 = vrot.slane %v739, 2
        %v1211 = vsel %vm893, %v1209, %v1210
        %v1212 = vrot.slane %v787, 2
        %v1213 = vsel %vm893, %v1210, %v1212
        %vm1230 = vcmask 261120
        %v1231 = vsel %vm1230, %v768, %v846
        %v1232 = vsel %vm1230, %v712, %v848
        %v1233 = vsel %vm1230, %v769, %v850
        %v1234 = vsel %vm1230, %v715, %v852
        %v1235 = vsel %vm1230, %v770, %v854
        %v1236 = vsel %vm1230, %v718, %v856
        %v1237 = vsel %vm1230, %v771, %v858
        %v1238 = vsel %vm1230, %v721, %v860
        %v1239 = vsel %vm1230, %v772, %v862
        %v1240 = vsel %vm1230, %v724, %v864
        %v1241 = vsel %vm1230, %v773, %v866
        %v1242 = vsel %vm1230, %v727, %v868
        %v1243 = vsel %vm1230, %v774, %v870
        %v1244 = vsel %vm1230, %v730, %v872
        %v1245 = vsel %vm1230, %v775, %v874
        %v1246 = vsel %vm1230, %v733, %v876
        %vm1247 = vcmask 523264
        %v1248 = vsel %vm1247, %v1231, %v935
        %v1249 = vsel %vm1247, %v1232, %v937
        %v1250 = vsel %vm1247, %v1233, %v939
        %v1251 = vsel %vm1247, %v1234, %v941
        %v1252 = vsel %vm1247, %v1235, %v943
        %v1253 = vsel %vm1247, %v1236, %v945
        %v1254 = vsel %vm1247, %v1237, %v947
        %v1255 = vsel %vm1247, %v1238, %v949
        %v1256 = vsel %vm1247, %v1239, %v951
        %v1257 = vsel %vm1247, %v1240, %v953
        %v1258 = vsel %vm1247, %v1241, %v955
        %v1259 = vsel %vm1247, %v1242, %v957
        %v1260 = vsel %vm1247, %v1243, %v959
        %v1261 = vsel %vm1247, %v1244, %v961
        %v1262 = vsel %vm1247, %v1245, %v963
        %v1263 = vsel %vm1247, %v1246, %v965
        %vm1264 = vcmask 785408
        %v1265 = vsel %vm1264, %v1248, %v984
        %v1266 = vsel %vm1264, %v1249, %v986
        %v1267 = vsel %vm1264, %v1250, %v988
        %v1268 = vsel %vm1264, %v1251, %v990
        %v1269 = vsel %vm1264, %v1252, %v992
        %v1270 = vsel %vm1264, %v1253, %v994
        %v1271 = vsel %vm1264, %v1254, %v996
        %v1272 = vsel %vm1264, %v1255, %v998
        %v1273 = vsel %vm1264, %v1256, %v1000
        %v1274 = vsel %vm1264, %v1257, %v1002
        %v1275 = vsel %vm1264, %v1258, %v1004
        %v1276 = vsel %vm1264, %v1259, %v1006
        %v1277 = vsel %vm1264, %v1260, %v1008
        %v1278 = vsel %vm1264, %v1261, %v1010
        %v1279 = vsel %vm1264, %v1262, %v1012
        %v1280 = vsel %vm1264, %v1263, %v1014
        %v1281 = vsel %vm1230, %v812, %v1059
        %v1282 = vsel %vm1230, %v814, %v1061
        %v1283 = vsel %vm1230, %v817, %v1063
        %v1284 = vsel %vm1230, %v819, %v1065
        %v1285 = vsel %vm1230, %v822, %v1067
        %v1286 = vsel %vm1230, %v824, %v1069
        %v1287 = vsel %vm1230, %v827, %v1071
        %v1288 = vsel %vm1230, %v829, %v1073
        %v1289 = vsel %vm1230, %v832, %v1075
        %v1290 = vsel %vm1230, %v834, %v1077
        %v1291 = vsel %vm1230, %v837, %v1079
        %v1292 = vsel %vm1230, %v839, %v1081
        %v1293 = vsel %vm1230, %v842, %v1083
        %v1294 = vsel %vm1230, %v844, %v1085
        %v1295 = vsel %vm1230, %v1034, %v1087
        %v1296 = vsel %vm1230, %v1036, %v1089
        %v1297 = vsel %vm1247, %v1281, %v1108
        %v1298 = vsel %vm1247, %v1282, %v1110
        %v1299 = vsel %vm1247, %v1283, %v1112
        %v1300 = vsel %vm1247, %v1284, %v1114
        %v1301 = vsel %vm1247, %v1285, %v1116
        %v1302 = vsel %vm1247, %v1286, %v1118
        %v1303 = vsel %vm1247, %v1287, %v1120
        %v1304 = vsel %vm1247, %v1288, %v1122
        %v1305 = vsel %vm1247, %v1289, %v1124
        %v1306 = vsel %vm1247, %v1290, %v1126
        %v1307 = vsel %vm1247, %v1291, %v1128
        %v1308 = vsel %vm1247, %v1292, %v1130
        %v1309 = vsel %vm1247, %v1293, %v1132
        %v1310 = vsel %vm1247, %v1294, %v1134
        %v1311 = vsel %vm1247, %v1295, %v1136
        %v1312 = vsel %vm1247, %v1296, %v1138
        %v1313 = vsel %vm1264, %v1297, %v1162
        %v1314 = vsel %vm1264, %v1298, %v1164
        %v1315 = vsel %vm1264, %v1299, %v1166
        %v1316 = vsel %vm1264, %v1300, %v1168
        %v1317 = vsel %vm1264, %v1301, %v1170
        %v1318 = vsel %vm1264, %v1302, %v1172
        %v1319 = vsel %vm1264, %v1303, %v1174
        %v1320 = vsel %vm1264, %v1304, %v1176
        %v1321 = vsel %vm1264, %v1305, %v1178
        %v1322 = vsel %vm1264, %v1306, %v1180
        %v1323 = vsel %vm1264, %v1307, %v1182
        %v1324 = vsel %vm1264, %v1308, %v1184
        %v1325 = vsel %vm1264, %v1309, %v1186
        %v1326 = vsel %vm1264, %v1310, %v1188
        %v1327 = vsel %vm1264, %v1311, %v1190
        %v1328 = vsel %vm1264, %v1312, %v1192
        %v1329 = vpack.c.bf16 %v1266, %v1265
        %v1330 = vpack.c.bf16 %v1314, %v1313
        %v1331 = vpack.c.bf16 %v908, %v906
        %v1332 = vpack.c.bf16 %v1268, %v1267
        %v1333 = vpack.c.bf16 %v1316, %v1315
        %v1334 = vpack.c.bf16 %v913, %v911
        %v1335 = vpack.c.bf16 %v1270, %v1269
        %v1336 = vpack.c.bf16 %v1318, %v1317
        %v1337 = vpack.c.bf16 %v918, %v916
        %v1338 = vpack.c.bf16 %v1272, %v1271
        %v1339 = vpack.c.bf16 %v1320, %v1319
        %v1340 = vpack.c.bf16 %v923, %v921
        %v1341 = vpack.c.bf16 %v1274, %v1273
        %v1342 = vpack.c.bf16 %v1322, %v1321
        %v1343 = vpack.c.bf16 %v928, %v926
        %v1344 = vpack.c.bf16 %v1276, %v1275
        %v1345 = vpack.c.bf16 %v1324, %v1323
        %v1346 = vpack.c.bf16 %v933, %v931
        %v1347 = vpack.c.bf16 %v1278, %v1277
        %v1348 = vpack.c.bf16 %v1326, %v1325
        %v1349 = vpack.c.bf16 %v1057, %v1055
        %v1350 = vpack.c.bf16 %v1280, %v1279
        %v1351 = vpack.c.bf16 %v1328, %v1327
        %v1352 = vpack.c.bf16 %v1213, %v1211
        %v1353 = vld [vmem:[%s3] sm:$0xf]
        %v1354 = vld [vmem:[%s3 + $0x4] sm:$0xf]
        %v1355 = vld [vmem:[%s3 + $0x8] sm:$0xf]
        %v1356 = vld [vmem:[%s3 + $0xc] sm:$0xf]
        %v1357 = vld [vmem:[%s3 + $0x10] sm:$0xf]
        %v1358 = vld [vmem:[%s3 + $0x14] sm:$0xf]
        %v1359 = vld [vmem:[%s3 + $0x18] sm:$0xf]
        %v1360 = vld [vmem:[%s3 + $0x1c] sm:$0xf]
        %v1361 = vld [vmem:[%s3 + $0x20] sm:$0xf]
        %v1362 = vld [vmem:[%s3 + $0x24] sm:$0xf]
        %v1363 = vld [vmem:[%s3 + $0x28] sm:$0xf]
        %v1364 = vld [vmem:[%s3 + $0x2c] sm:$0xf]
        %v1365 = vld [vmem:[%s3 + $0x30] sm:$0xf]
        %v1366 = vld [vmem:[%s3 + $0x34] sm:$0xf]
        %v1367 = vld [vmem:[%s3 + $0x38] sm:$0xf]
        %v1368 = vld [vmem:[%s3 + $0x3c] sm:$0xf]
        %v1369 = vld [vmem:[%s3 + $0x40] sm:$0xf]
        %v1370 = vld [vmem:[%s3 + $0x44] sm:$0xf]
        %v1371 = vld [vmem:[%s3 + $0x48] sm:$0xf]
        %v1372 = vld [vmem:[%s3 + $0x4c] sm:$0xf]
        %v1373 = vld [vmem:[%s3 + $0x50] sm:$0xf]
        %v1374 = vld [vmem:[%s3 + $0x54] sm:$0xf]
        %v1375 = vld [vmem:[%s3 + $0x58] sm:$0xf]
        %v1376 = vld [vmem:[%s3 + $0x5c] sm:$0xf]
        %v1377 = vld [vmem:[%s3 + $0x60] sm:$0xf]
        %v1378 = vld [vmem:[%s3 + $0x64] sm:$0xf]
        %v1379 = vld [vmem:[%s3 + $0x68] sm:$0xf]
        %v1380 = vld [vmem:[%s3 + $0x6c] sm:$0xf]
        %v1381 = vld [vmem:[%s3 + $0x70] sm:$0xf]
        %v1382 = vld [vmem:[%s3 + $0x74] sm:$0xf]
        %v1383 = vld [vmem:[%s3 + $0x78] sm:$0xf]
        %v1384 = vld [vmem:[%s3 + $0x7c] sm:$0xf]
        %v1385 = vld [vmem:[%s3 + $0x80] sm:$0xf]
        %v1386 = vld [vmem:[%s3 + $0x84] sm:$0xf]
        %v1387 = vld [vmem:[%s3 + $0x88] sm:$0xf]
        %v1388 = vld [vmem:[%s3 + $0x8c] sm:$0xf]
        %v1389 = vld [vmem:[%s4] sm:$0x1]
        %v1391 = vlaneseq
        %v1392 = vshrl.u32 %v1391, 7
        %v1393 = vsub.s32 0, %v1392
        %v1394 = vrot.slane %v1389, %v1393
        %v1432 = vunpack.c.l.b16 %v1353
        %v1433 = vunpack.c.l.b16 %v1354
        %v1434 = vunpack.c.l.b16 %v1355
        %v1435 = vunpack.c.l.b16 %v1356
        %v1436 = vunpack.c.l.b16 %v1357
        %v1437 = vunpack.c.l.b16 %v1358
        %v1438 = vunpack.c.l.b16 %v1359
        %v1439 = vunpack.c.l.b16 %v1360
        %v1440 = vunpack.c.l.b16 %v1361
        %v1441 = vunpack.c.l.b16 %v1362
        %v1442 = vunpack.c.l.b16 %v1363
        %v1443 = vunpack.c.l.b16 %v1364
        %v1444 = vunpack.c.l.b16 %v1365
        %v1445 = vunpack.c.l.b16 %v1366
        %v1446 = vunpack.c.l.b16 %v1367
        %v1447 = vunpack.c.l.b16 %v1368
        %v1448 = vunpack.c.l.b16 %v1369
        %v1449 = vunpack.c.l.b16 %v1370
        %v1450 = vunpack.c.l.b16 %v1371
        %v1451 = vunpack.c.l.b16 %v1372
        %v1452 = vunpack.c.l.b16 %v1373
        %v1453 = vunpack.c.l.b16 %v1374
        %v1454 = vunpack.c.l.b16 %v1375
        %v1455 = vunpack.c.l.b16 %v1376
        %v1456 = vunpack.c.l.b16 %v1377
        %v1457 = vunpack.c.l.b16 %v1378
        %v1458 = vunpack.c.l.b16 %v1379
        %v1459 = vunpack.c.l.b16 %v1380
        %v1460 = vunpack.c.l.b16 %v1381
        %v1461 = vunpack.c.l.b16 %v1382
        %v1462 = vunpack.c.l.b16 %v1383
        %v1463 = vunpack.c.l.b16 %v1384
        %v1464 = vunpack.c.l.b16 %v1385
        %v1465 = vunpack.c.l.b16 %v1386
        %v1466 = vunpack.c.l.b16 %v1387
        %v1467 = vunpack.c.l.b16 %v1388
        %v1468 = vpack.c.b16 %v1433, %v1432
        %v1469 = vpack.c.b16 %v1435, %v1434
        %v1470 = vpack.c.b16 %v1437, %v1436
        %v1471 = vpack.c.b16 %v1439, %v1438
        %v1472 = vpack.c.b16 %v1441, %v1440
        %v1473 = vpack.c.b16 %v1443, %v1442
        %v1474 = vpack.c.b16 %v1445, %v1444
        %v1475 = vpack.c.b16 %v1447, %v1446
        %v1476 = vpack.c.b16 %v1449, %v1448
        %v1477 = vpack.c.b16 %v1451, %v1450
        %v1478 = vpack.c.b16 %v1453, %v1452
        %v1479 = vpack.c.b16 %v1455, %v1454
        %v1480 = vpack.c.b16 %v1457, %v1456
        %v1481 = vpack.c.b16 %v1459, %v1458
        %v1482 = vpack.c.b16 %v1461, %v1460
        %v1483 = vpack.c.b16 %v1463, %v1462
        %v1484 = vpack.c.b16 %v1465, %v1464
        %v1485 = vpack.c.b16 %v1467, %v1466
        %v1505 = vsel %vm1230, %v1331, 0
        %v1508 = vsel %vm1230, %v1334, 0
        %v1511 = vsel %vm1230, %v1337, 0
        %v1514 = vsel %vm1230, %v1340, 0
        %v1517 = vsel %vm1230, %v1343, 0
        %v1520 = vsel %vm1230, %v1346, 0
        %v1523 = vsel %vm1230, %v1349, 0
        %v1526 = vsel %vm1230, %v1352, 0
        %1528 = vmatprep.subr.bf16.mxu0 0
        %1529 = vmatpush1.bf16.msra.mxu0 %v1468
        %1530 = vmatprep.subr.bf16.mxu0 0
        %1531 = vmatpush1.bf16.msra.mxu0 %v1469
        %1532 = vmatprep.subr.bf16.mxu0 0
        %1533 = vmatpush1.bf16.msra.mxu0 %v1470
        %1534 = vmatprep.subr.bf16.mxu0 0
        %1535 = vmatpush1.bf16.msra.mxu0 %v1471
        %1536 = vmatprep.subr.bf16.mxu0 0
        %1537 = vmatpush1.bf16.msra.mxu0 %v1472
        %1538 = vmatprep.subr.bf16.mxu0 0
        %1539 = vmatpush1.bf16.msra.mxu0 %v1473
        %1540 = vmatprep.subr.bf16.mxu0 0
        %1541 = vmatpush1.bf16.msra.mxu0 %v1474
        %1542 = vmatprep.subr.bf16.mxu0 0
        %1543 = vmatpush1.bf16.msra.mxu0 %v1475
        %1544 = vmatprep.subr.bf16.mxu0 0
        %1545 = vmatpush1.bf16.msra.mxu0 %v1476
        %1546 = vmatprep.subr.bf16.mxu0 0
        %1547 = vmatpush1.bf16.msra.mxu0 %v1477
        %1548 = vmatprep.subr.bf16.mxu0 0
        %1549 = vmatpush1.bf16.msra.mxu0 %v1478
        %1550 = vmatprep.subr.bf16.mxu0 0
        %1551 = vmatpush1.bf16.msra.mxu0 %v1479
        %1552 = vmatprep.subr.bf16.mxu0 0
        %1553 = vmatpush1.bf16.msra.mxu0 %v1480
        %1554 = vmatprep.subr.bf16.mxu0 0
        %1555 = vmatpush1.bf16.msra.mxu0 %v1481
        %1556 = vmatprep.subr.bf16.mxu0 0
        %1557 = vmatpush1.bf16.msra.mxu0 %v1482
        %1558 = vmatprep.subr.bf16.mxu0 0
        %1559 = vmatpush1.bf16.msra.mxu0 %v1483
        %1560 = vmatprep.mubr.bf16.mxu0 %v1330
        %1561 = vmatmul.mubr.bf16.gmra.mrb[0].mxu0 %v1329
        %v1562 = vpop.f32.mrb[0].mxu0
        %v1563 = vadd.f32 %v1394, %v1562
        %v1564 = vpop.f32.mrb[0].mxu0
        %v1565 = vpop.f32.mrb[0].mxu0
        %v1566 = vadd.f32 %v1394, %v1565
        %v1567 = vpop.f32.mrb[0].mxu0
        %1568 = vmatprep.mubr.bf16.mxu0 %v1333
        %1569 = vmatmul.mubr.bf16.gmra.mrb[0].mxu0 %v1332
        %v1570 = vpop.f32.mrb[0].mxu0
        %v1571 = vadd.f32 %v1394, %v1570
        %v1572 = vpop.f32.mrb[0].mxu0
        %v1573 = vpop.f32.mrb[0].mxu0
        %v1574 = vadd.f32 %v1394, %v1573
        %v1575 = vpop.f32.mrb[0].mxu0
        %1576 = vmatprep.mubr.bf16.mxu0 %v1336
        %1577 = vmatmul.mubr.bf16.gmra.mrb[0].mxu0 %v1335
        %v1578 = vpop.f32.mrb[0].mxu0
        %v1579 = vadd.f32 %v1394, %v1578
        %v1580 = vpop.f32.mrb[0].mxu0
        %v1581 = vpop.f32.mrb[0].mxu0
        %v1582 = vadd.f32 %v1394, %v1581
        %v1583 = vpop.f32.mrb[0].mxu0
        %1584 = vmatprep.mubr.bf16.mxu0 %v1339
        %1585 = vmatmul.mubr.bf16.gmra.mrb[0].mxu0 %v1338
        %v1586 = vpop.f32.mrb[0].mxu0
        %v1587 = vadd.f32 %v1394, %v1586
        %v1588 = vpop.f32.mrb[0].mxu0
        %v1589 = vpop.f32.mrb[0].mxu0
        %v1590 = vadd.f32 %v1394, %v1589
        %v1591 = vpop.f32.mrb[0].mxu0
        %1592 = vmatprep.mubr.bf16.mxu0 %v1342
        %1593 = vmatmul.mubr.bf16.gmra.mrb[0].mxu0 %v1341
        %v1594 = vpop.f32.mrb[0].mxu0
        %v1595 = vadd.f32 %v1394, %v1594
        %v1596 = vpop.f32.mrb[0].mxu0
        %v1597 = vpop.f32.mrb[0].mxu0
        %v1598 = vadd.f32 %v1394, %v1597
        %v1599 = vpop.f32.mrb[0].mxu0
        %1600 = vmatprep.mubr.bf16.mxu0 %v1345
        %1601 = vmatmul.mubr.bf16.gmra.mrb[0].mxu0 %v1344
        %v1602 = vpop.f32.mrb[0].mxu0
        %v1603 = vadd.f32 %v1394, %v1602
        %v1604 = vpop.f32.mrb[0].mxu0
        %v1605 = vpop.f32.mrb[0].mxu0
        %v1606 = vadd.f32 %v1394, %v1605
        %v1607 = vpop.f32.mrb[0].mxu0
        %1608 = vmatprep.mubr.bf16.mxu0 %v1348
        %1609 = vmatmul.mubr.bf16.gmra.mrb[0].mxu0 %v1347
        %v1610 = vpop.f32.mrb[0].mxu0
        %v1611 = vadd.f32 %v1394, %v1610
        %v1612 = vpop.f32.mrb[0].mxu0
        %v1613 = vpop.f32.mrb[0].mxu0
        %v1614 = vadd.f32 %v1394, %v1613
        %v1615 = vpop.f32.mrb[0].mxu0
        %1616 = vmatprep.mubr.bf16.mxu0 %v1351
        %1617 = vmatmul.mubr.bf16.gmra.mrb[0].mxu0 %v1350
        %v1618 = vpop.f32.mrb[0].mxu0
        %v1619 = vadd.f32 %v1394, %v1618
        %v1620 = vpop.f32.mrb[0].mxu0
        %v1621 = vpop.f32.mrb[0].mxu0
        %v1622 = vadd.f32 %v1394, %v1621
        %v1623 = vpop.f32.mrb[0].mxu0
        %1624 = vdwg.mxu0
        %1625 = vmatprep.subr.bf16.mxu0 0
        %1626 = vmatpush1.bf16.msra.mxu0 %v1484
        %1627 = vmatprep.subr.bf16.mxu0 0
        %1628 = vmatpush1.bf16.msra.mxu0 %v1485
        %1629 = vmatprep.subr.bf16.mxu0 0
        %1630 = vmatpush1.bf16.msra.mxu0 0
        %1631 = vmatprep.subr.bf16.mxu0 0
        %1632 = vmatpush1.bf16.msra.mxu0 0
        %1633 = vmatprep.subr.bf16.mxu0 0
        %1634 = vmatpush1.bf16.msra.mxu0 0
        %1635 = vmatprep.subr.bf16.mxu0 0
        %1636 = vmatpush1.bf16.msra.mxu0 0
        %1637 = vmatprep.subr.bf16.mxu0 0
        %1638 = vmatpush1.bf16.msra.mxu0 0
        %1639 = vmatprep.subr.bf16.mxu0 0
        %1640 = vmatpush1.bf16.msra.mxu0 0
        %1641 = vmatprep.subr.bf16.mxu0 0
        %1642 = vmatpush1.bf16.msra.mxu0 0
        %1643 = vmatprep.subr.bf16.mxu0 0
        %1644 = vmatpush1.bf16.msra.mxu0 0
        %1645 = vmatprep.subr.bf16.mxu0 0
        %1646 = vmatpush1.bf16.msra.mxu0 0
        %1647 = vmatprep.subr.bf16.mxu0 0
        %1648 = vmatpush1.bf16.msra.mxu0 0
        %1649 = vmatprep.subr.bf16.mxu0 0
        %1650 = vmatpush1.bf16.msra.mxu0 0
        %1651 = vmatprep.subr.bf16.mxu0 0
        %1652 = vmatpush1.bf16.msra.mxu0 0
        %1653 = vmatprep.subr.bf16.mxu0 0
        %1654 = vmatpush1.bf16.msra.mxu0 0
        %1655 = vmatprep.subr.bf16.mxu0 0
        %1656 = vmatpush1.bf16.msra.mxu0 0
        %1657 = vmatprep.mubr.bf16.mxu0 0
        %1658 = vmatmul.mubr.bf16.gmra.mrb[0].mxu0 %v1505
        %v1659 = vpop.f32.mrb[0].mxu0
        %v1660 = vadd.f32 %v1563, %v1659
        %v1661 = vpop.f32.mrb[0].mxu0
        %v1662 = vpop.f32.mrb[0].mxu0
        %v1663 = vadd.f32 %v1566, %v1662
        %v1664 = vpop.f32.mrb[0].mxu0
        %1665 = vmatprep.mubr.bf16.mxu0 0
        %1666 = vmatmul.mubr.bf16.gmra.mrb[0].mxu0 %v1508
        %v1667 = vpop.f32.mrb[0].mxu0
        %v1668 = vadd.f32 %v1571, %v1667
        %v1669 = vpop.f32.mrb[0].mxu0
        %v1670 = vpop.f32.mrb[0].mxu0
        %v1671 = vadd.f32 %v1574, %v1670
        %v1672 = vpop.f32.mrb[0].mxu0
        %1673 = vmatprep.mubr.bf16.mxu0 0
        %1674 = vmatmul.mubr.bf16.gmra.mrb[0].mxu0 %v1511
        %v1675 = vpop.f32.mrb[0].mxu0
        %v1676 = vadd.f32 %v1579, %v1675
        %v1677 = vpop.f32.mrb[0].mxu0
        %v1678 = vpop.f32.mrb[0].mxu0
        %v1679 = vadd.f32 %v1582, %v1678
        %v1680 = vpop.f32.mrb[0].mxu0
        %1681 = vmatprep.mubr.bf16.mxu0 0
        %1682 = vmatmul.mubr.bf16.gmra.mrb[0].mxu0 %v1514
        %v1683 = vpop.f32.mrb[0].mxu0
        %v1684 = vadd.f32 %v1587, %v1683
        %v1685 = vpop.f32.mrb[0].mxu0
        %v1686 = vpop.f32.mrb[0].mxu0
        %v1687 = vadd.f32 %v1590, %v1686
        %v1688 = vpop.f32.mrb[0].mxu0
        %1689 = vmatprep.mubr.bf16.mxu0 0
        %1690 = vmatmul.mubr.bf16.gmra.mrb[0].mxu0 %v1517
        %v1691 = vpop.f32.mrb[0].mxu0
        %v1692 = vadd.f32 %v1595, %v1691
        %v1693 = vpop.f32.mrb[0].mxu0
        %v1694 = vpop.f32.mrb[0].mxu0
        %v1695 = vadd.f32 %v1598, %v1694
        %v1696 = vpop.f32.mrb[0].mxu0
        %1697 = vmatprep.mubr.bf16.mxu0 0
        %1698 = vmatmul.mubr.bf16.gmra.mrb[0].mxu0 %v1520
        %v1699 = vpop.f32.mrb[0].mxu0
        %v1700 = vadd.f32 %v1603, %v1699
        %v1701 = vpop.f32.mrb[0].mxu0
        %v1702 = vpop.f32.mrb[0].mxu0
        %v1703 = vadd.f32 %v1606, %v1702
        %v1704 = vpop.f32.mrb[0].mxu0
        %1705 = vmatprep.mubr.bf16.mxu0 0
        %1706 = vmatmul.mubr.bf16.gmra.mrb[0].mxu0 %v1523
        %v1707 = vpop.f32.mrb[0].mxu0
        %v1708 = vadd.f32 %v1611, %v1707
        %v1709 = vpop.f32.mrb[0].mxu0
        %v1710 = vpop.f32.mrb[0].mxu0
        %v1711 = vadd.f32 %v1614, %v1710
        %v1712 = vpop.f32.mrb[0].mxu0
        %1713 = vmatprep.mubr.bf16.mxu0 0
        %1714 = vmatmul.mubr.bf16.gmra.mrb[0].mxu0 %v1526
        %v1715 = vpop.f32.mrb[0].mxu0
        %v1716 = vadd.f32 %v1619, %v1715
        %v1717 = vpop.f32.mrb[0].mxu0
        %v1718 = vpop.f32.mrb[0].mxu0
        %v1719 = vadd.f32 %v1622, %v1718
        %v1720 = vpop.f32.mrb[0].mxu0
        %1721 = vdwg.mxu0
        %v1722 = vmax.f32 %v1660, 0.0
        %v1723 = vmax.f32 %v1663, 0.0
        %v1724 = vmax.f32 %v1668, 0.0
        %v1725 = vmax.f32 %v1671, 0.0
        %v1726 = vmax.f32 %v1676, 0.0
        %v1727 = vmax.f32 %v1679, 0.0
        %v1728 = vmax.f32 %v1684, 0.0
        %v1729 = vmax.f32 %v1687, 0.0
        %v1730 = vmax.f32 %v1692, 0.0
        %v1731 = vmax.f32 %v1695, 0.0
        %v1732 = vmax.f32 %v1700, 0.0
        %v1733 = vmax.f32 %v1703, 0.0
        %v1734 = vmax.f32 %v1708, 0.0
        %v1735 = vmax.f32 %v1711, 0.0
        %v1736 = vmax.f32 %v1716, 0.0
        %v1737 = vmax.f32 %v1719, 0.0
        %v1738 = vpack.c.bf16 %v1723, %v1722
        %v1739 = vpack.c.bf16 %v1725, %v1724
        %v1740 = vpack.c.bf16 %v1727, %v1726
        %v1741 = vpack.c.bf16 %v1729, %v1728
        %v1742 = vpack.c.bf16 %v1731, %v1730
        %v1743 = vpack.c.bf16 %v1733, %v1732
        %v1744 = vpack.c.bf16 %v1735, %v1734
        %v1745 = vpack.c.bf16 %v1737, %v1736
        %v1746 = vld [vmem:[%s5] sm:$0xf]
        %v1747 = vld [vmem:[%s5 + $0x4] sm:$0xf]
        %v1748 = vld [vmem:[%s5 + $0x8] sm:$0xf]
        %v1749 = vld [vmem:[%s5 + $0xc] sm:$0xf]
        %v1750 = vld [vmem:[%s6] sm:$0x1]
        %v1752 = vlaneseq
        %v1753 = vshrl.u32 %v1752, 7
        %v1754 = vsub.s32 0, %v1753
        %v1755 = vrot.slane %v1750, %v1754
        %v1761 = vunpack.c.l.b16 %v1746
        %v1762 = vunpack.c.l.b16 %v1747
        %v1763 = vunpack.c.l.b16 %v1748
        %v1764 = vunpack.c.l.b16 %v1749
        %v1765 = vpack.c.b16 %v1762, %v1761
        %v1766 = vpack.c.b16 %v1764, %v1763
        %v1770 = vsel %vm1230, %v1738, 0
        %v1773 = vsel %vm1230, %v1739, 0
        %v1776 = vsel %vm1230, %v1740, 0
        %v1779 = vsel %vm1230, %v1741, 0
        %v1782 = vsel %vm1230, %v1742, 0
        %v1785 = vsel %vm1230, %v1743, 0
        %v1788 = vsel %vm1230, %v1744, 0
        %v1791 = vsel %vm1230, %v1745, 0
        %1793 = vmatprep.subr.bf16.mxu0 0
        %1794 = vmatpush1.bf16.msra.mxu0 %v1765
        %1795 = vmatprep.subr.bf16.mxu0 0
        %1796 = vmatpush1.bf16.msra.mxu0 %v1766
        %1797 = vmatprep.subr.bf16.mxu0 0
        %1798 = vmatpush1.bf16.msra.mxu0 0
        %1799 = vmatprep.subr.bf16.mxu0 0
        %1800 = vmatpush1.bf16.msra.mxu0 0
        %1801 = vmatprep.subr.bf16.mxu0 0
        %1802 = vmatpush1.bf16.msra.mxu0 0
        %1803 = vmatprep.subr.bf16.mxu0 0
        %1804 = vmatpush1.bf16.msra.mxu0 0
        %1805 = vmatprep.subr.bf16.mxu0 0
        %1806 = vmatpush1.bf16.msra.mxu0 0
        %1807 = vmatprep.subr.bf16.mxu0 0
        %1808 = vmatpush1.bf16.msra.mxu0 0
        %1809 = vmatprep.subr.bf16.mxu0 0
        %1810 = vmatpush1.bf16.msra.mxu0 0
        %1811 = vmatprep.subr.bf16.mxu0 0
        %1812 = vmatpush1.bf16.msra.mxu0 0
        %1813 = vmatprep.subr.bf16.mxu0 0
        %1814 = vmatpush1.bf16.msra.mxu0 0
        %1815 = vmatprep.subr.bf16.mxu0 0
        %1816 = vmatpush1.bf16.msra.mxu0 0
        %1817 = vmatprep.subr.bf16.mxu0 0
        %1818 = vmatpush1.bf16.msra.mxu0 0
        %1819 = vmatprep.subr.bf16.mxu0 0
        %1820 = vmatpush1.bf16.msra.mxu0 0
        %1821 = vmatprep.subr.bf16.mxu0 0
        %1822 = vmatpush1.bf16.msra.mxu0 0
        %1823 = vmatprep.subr.bf16.mxu0 0
        %1824 = vmatpush1.bf16.msra.mxu0 0
        %1825 = vmatprep.mubr.bf16.mxu0 0
        %1826 = vmatmul.mubr.bf16.gmra.mrb[0].mxu0 %v1770
        %v1827 = vpop.f32.mrb[0].mxu0
        %v1828 = vadd.f32 %v1755, %v1827
        %v1829 = vpop.f32.mrb[0].mxu0
        %v1830 = vpop.f32.mrb[0].mxu0
        %v1831 = vadd.f32 %v1755, %v1830
        %v1832 = vpop.f32.mrb[0].mxu0
        %1833 = vmatprep.mubr.bf16.mxu0 0
        %1834 = vmatmul.mubr.bf16.gmra.mrb[0].mxu0 %v1773
        %v1835 = vpop.f32.mrb[0].mxu0
        %v1836 = vadd.f32 %v1755, %v1835
        %v1837 = vpop.f32.mrb[0].mxu0
        %v1838 = vpop.f32.mrb[0].mxu0
        %v1839 = vadd.f32 %v1755, %v1838
        %v1840 = vpop.f32.mrb[0].mxu0
        %1841 = vmatprep.mubr.bf16.mxu0 0
        %1842 = vmatmul.mubr.bf16.gmra.mrb[0].mxu0 %v1776
        %v1843 = vpop.f32.mrb[0].mxu0
        %v1844 = vadd.f32 %v1755, %v1843
        %v1845 = vpop.f32.mrb[0].mxu0
        %v1846 = vpop.f32.mrb[0].mxu0
        %v1847 = vadd.f32 %v1755, %v1846
        %v1848 = vpop.f32.mrb[0].mxu0
        %1849 = vmatprep.mubr.bf16.mxu0 0
        %1850 = vmatmul.mubr.bf16.gmra.mrb[0].mxu0 %v1779
        %v1851 = vpop.f32.mrb[0].mxu0
        %v1852 = vadd.f32 %v1755, %v1851
        %v1853 = vpop.f32.mrb[0].mxu0
        %v1854 = vpop.f32.mrb[0].mxu0
        %v1855 = vadd.f32 %v1755, %v1854
        %v1856 = vpop.f32.mrb[0].mxu0
        %1857 = vmatprep.mubr.bf16.mxu0 0
        %1858 = vmatmul.mubr.bf16.gmra.mrb[0].mxu0 %v1782
        %v1859 = vpop.f32.mrb[0].mxu0
        %v1860 = vadd.f32 %v1755, %v1859
        %v1861 = vpop.f32.mrb[0].mxu0
        %v1862 = vpop.f32.mrb[0].mxu0
        %v1863 = vadd.f32 %v1755, %v1862
        %v1864 = vpop.f32.mrb[0].mxu0
        %1865 = vmatprep.mubr.bf16.mxu0 0
        %1866 = vmatmul.mubr.bf16.gmra.mrb[0].mxu0 %v1785
        %v1867 = vpop.f32.mrb[0].mxu0
        %v1868 = vadd.f32 %v1755, %v1867
        %v1869 = vpop.f32.mrb[0].mxu0
        %v1870 = vpop.f32.mrb[0].mxu0
        %v1871 = vadd.f32 %v1755, %v1870
        %v1872 = vpop.f32.mrb[0].mxu0
        %1873 = vmatprep.mubr.bf16.mxu0 0
        %1874 = vmatmul.mubr.bf16.gmra.mrb[0].mxu0 %v1788
        %v1875 = vpop.f32.mrb[0].mxu0
        %v1876 = vadd.f32 %v1755, %v1875
        %v1877 = vpop.f32.mrb[0].mxu0
        %v1878 = vpop.f32.mrb[0].mxu0
        %v1879 = vadd.f32 %v1755, %v1878
        %v1880 = vpop.f32.mrb[0].mxu0
        %1881 = vmatprep.mubr.bf16.mxu0 0
        %1882 = vmatmul.mubr.bf16.gmra.mrb[0].mxu0 %v1791
        %v1883 = vpop.f32.mrb[0].mxu0
        %v1884 = vadd.f32 %v1755, %v1883
        %v1885 = vpop.f32.mrb[0].mxu0
        %v1886 = vpop.f32.mrb[0].mxu0
        %v1887 = vadd.f32 %v1755, %v1886
        %v1888 = vpop.f32.mrb[0].mxu0
        %1889 = vdwg.mxu0
        %s1890 = scalar_lea.vmem %s362, %s365 [#allocation5]
        %1891 = vst [vmem:[%s1890] sm:$0xff] %v1828
        %1892 = vst [vmem:[%s1890 + $0x8] sm:$0xff] %v1831
        %1893 = vst [vmem:[%s1890 + $0x10] sm:$0xff] %v1836
        %1894 = vst [vmem:[%s1890 + $0x18] sm:$0xff] %v1839
        %1895 = vst [vmem:[%s1890 + $0x20] sm:$0xff] %v1844
        %1896 = vst [vmem:[%s1890 + $0x28] sm:$0xff] %v1847
        %1897 = vst [vmem:[%s1890 + $0x30] sm:$0xff] %v1852
        %1898 = vst [vmem:[%s1890 + $0x38] sm:$0xff] %v1855
        %1899 = vst [vmem:[%s1890 + $0x40] sm:$0xff] %v1860
        %1900 = vst [vmem:[%s1890 + $0x48] sm:$0xff] %v1863
        %1901 = vst [vmem:[%s1890 + $0x50] sm:$0xff] %v1868
        %1902 = vst [vmem:[%s1890 + $0x58] sm:$0xff] %v1871
        %1903 = vst [vmem:[%s1890 + $0x60] sm:$0xff] %v1876
        %1904 = vst [vmem:[%s1890 + $0x68] sm:$0xff] %v1879
        %1905 = vst [vmem:[%s1890 + $0x70] sm:$0xff] %v1884
        %1906 = vst [vmem:[%s1890 + $0x78] sm:$0xff] %v1887
        %p1907 = scmp.eq.s32.totalorder %s31, 1
        // Predicated region
        $region61: #{tpu_custom_call.1} parent=55 // pred_check
          %p1908 = pneg %p1907
        $region62: #{tpu_custom_call.1} parent=55 // pred_check_branch
          %1910 = sbr.rel (%p1908) target = $region64
        $region63: #{tpu_custom_call.1} parent=55 // pred_region
          %v1911 = vld [vmem:[%s362] sm:$0xff]
          %v1912 = vld [vmem:[%s362 + $0x8] sm:$0xff]
          %v1913 = vld [vmem:[%s362 + $0x10] sm:$0xff]
          %v1914 = vld [vmem:[%s362 + $0x18] sm:$0xff]
          %v1915 = vld [vmem:[%s362 + $0x20] sm:$0xff]
          %v1916 = vld [vmem:[%s362 + $0x28] sm:$0xff]
          %v1917 = vld [vmem:[%s362 + $0x30] sm:$0xff]
          %v1918 = vld [vmem:[%s362 + $0x38] sm:$0xff]
          %v1919 = vld [vmem:[%s362 + $0x40] sm:$0xff]
          %v1920 = vld [vmem:[%s362 + $0x48] sm:$0xff]
          %v1921 = vld [vmem:[%s362 + $0x50] sm:$0xff]
          %v1922 = vld [vmem:[%s362 + $0x58] sm:$0xff]
          %v1923 = vld [vmem:[%s362 + $0x60] sm:$0xff]
          %v1924 = vld [vmem:[%s362 + $0x68] sm:$0xff]
          %v1925 = vld [vmem:[%s362 + $0x70] sm:$0xff]
          %v1926 = vld [vmem:[%s362 + $0x78] sm:$0xff]
          %v1927 = vld [vmem:[%s362 + $0x80] sm:$0xff]
          %v1928 = vld [vmem:[%s362 + $0x88] sm:$0xff]
          %v1929 = vld [vmem:[%s362 + $0x90] sm:$0xff]
          %v1930 = vld [vmem:[%s362 + $0x98] sm:$0xff]
          %v1931 = vld [vmem:[%s362 + $0xa0] sm:$0xff]
          %v1932 = vld [vmem:[%s362 + $0xa8] sm:$0xff]
          %v1933 = vld [vmem:[%s362 + $0xb0] sm:$0xff]
          %v1934 = vld [vmem:[%s362 + $0xb8] sm:$0xff]
          %v1935 = vld [vmem:[%s362 + $0xc0] sm:$0xff]
          %v1936 = vld [vmem:[%s362 + $0xc8] sm:$0xff]
          %v1937 = vld [vmem:[%s362 + $0xd0] sm:$0xff]
          %v1938 = vld [vmem:[%s362 + $0xd8] sm:$0xff]
          %v1939 = vld [vmem:[%s362 + $0xe0] sm:$0xff]
          %v1940 = vld [vmem:[%s362 + $0xe8] sm:$0xff]
          %v1941 = vld [vmem:[%s362 + $0xf0] sm:$0xff]
          %v1942 = vld [vmem:[%s362 + $0xf8] sm:$0xff]
          %v1943 = vadd.f32 %v1911, %v1912
          %v1944 = vadd.f32 %v1943, %v1913
          %v1945 = vadd.f32 %v1944, %v1914
          %v1946 = vadd.f32 %v1945, %v1915
          %v1947 = vadd.f32 %v1946, %v1916
          %v1948 = vadd.f32 %v1947, %v1917
          %v1949 = vadd.f32 %v1948, %v1918
          %v1950 = vadd.f32 %v1949, %v1919
          %v1951 = vadd.f32 %v1950, %v1920
          %v1952 = vadd.f32 %v1951, %v1921
          %v1953 = vadd.f32 %v1952, %v1922
          %v1954 = vadd.f32 %v1953, %v1923
          %v1955 = vadd.f32 %v1954, %v1924
          %v1956 = vadd.f32 %v1955, %v1925
          %v1957 = vadd.f32 %v1956, %v1926
          %v1958 = vadd.f32 %v1957, %v1927
          %v1959 = vadd.f32 %v1958, %v1928
          %v1960 = vadd.f32 %v1959, %v1929
          %v1961 = vadd.f32 %v1960, %v1930
          %v1962 = vadd.f32 %v1961, %v1931
          %v1963 = vadd.f32 %v1962, %v1932
          %v1964 = vadd.f32 %v1963, %v1933
          %v1965 = vadd.f32 %v1964, %v1934
          %v1966 = vadd.f32 %v1965, %v1935
          %v1967 = vadd.f32 %v1966, %v1936
          %v1968 = vadd.f32 %v1967, %v1937
          %v1969 = vadd.f32 %v1968, %v1938
          %v1970 = vadd.f32 %v1969, %v1939
          %v1971 = vadd.f32 %v1970, %v1940
          %v1972 = vadd.f32 %v1971, %v1941
          %v1973 = vadd.f32 %v1972, %v1942
          %v1974 = vrot.slane %v1973, 4
          %v1975 = vadd.f32 %v1973, %v1974
          %v1976 = vrot.slane %v1975, 2
          %v1977 = vadd.f32 %v1975, %v1976
          %v1978 = vrot.slane %v1977, 1
          %v1979 = vadd.f32 %v1977, %v1978
          %v1980 = vmul.f32 %v1979, 0.00390625
          %v1981 = vpack.c.bf16 %v1980, %v1980
          %v1982 = vld [vmem:[%s7] sm:$0xf]
          %v1983 = vld [vmem:[%s7 + $0x4] sm:$0xf]
          %v1984 = vld [vmem:[%s7 + $0x8] sm:$0xf]
          %v1985 = vld [vmem:[%s7 + $0xc] sm:$0xf]
          %v1986 = vld [vmem:[%s7 + $0x10] sm:$0xf]
          %v1987 = vld [vmem:[%s7 + $0x14] sm:$0xf]
          %v1988 = vld [vmem:[%s7 + $0x18] sm:$0xf]
          %v1989 = vld [vmem:[%s7 + $0x1c] sm:$0xf]
          %v1990 = vld [vmem:[%s7 + $0x20] sm:$0xf]
          %v1991 = vld [vmem:[%s7 + $0x24] sm:$0xf]
          %v1992 = vld [vmem:[%s7 + $0x28] sm:$0xf]
          %v1993 = vld [vmem:[%s7 + $0x2c] sm:$0xf]
          %v1994 = vld [vmem:[%s7 + $0x30] sm:$0xf]
          %v1995 = vld [vmem:[%s7 + $0x34] sm:$0xf]
          %v1996 = vld [vmem:[%s7 + $0x38] sm:$0xf]
          %v1997 = vld [vmem:[%s7 + $0x3c] sm:$0xf]
          %v2014 = vunpack.c.l.b16 %v1982
          %v2015 = vunpack.c.l.b16 %v1983
          %v2016 = vunpack.c.l.b16 %v1984
          %v2017 = vunpack.c.l.b16 %v1985
          %v2018 = vunpack.c.l.b16 %v1986
          %v2019 = vunpack.c.l.b16 %v1987
          %v2020 = vunpack.c.l.b16 %v1988
          %v2021 = vunpack.c.l.b16 %v1989
          %v2022 = vunpack.c.l.b16 %v1990
          %v2023 = vunpack.c.l.b16 %v1991
          %v2024 = vunpack.c.l.b16 %v1992
          %v2025 = vunpack.c.l.b16 %v1993
          %v2026 = vunpack.c.l.b16 %v1994
          %v2027 = vunpack.c.l.b16 %v1995
          %v2028 = vunpack.c.l.b16 %v1996
          %v2029 = vunpack.c.l.b16 %v1997
          %v2030 = vpack.c.b16 %v2015, %v2014
          %v2031 = vpack.c.b16 %v2017, %v2016
          %v2032 = vpack.c.b16 %v2019, %v2018
          %v2033 = vpack.c.b16 %v2021, %v2020
          %v2034 = vpack.c.b16 %v2023, %v2022
          %v2035 = vpack.c.b16 %v2025, %v2024
          %v2036 = vpack.c.b16 %v2027, %v2026
          %v2037 = vpack.c.b16 %v2029, %v2028
          %2046 = vmatprep.subr.bf16.mxu0 0
          %2047 = vmatpush1.bf16.msra.mxu0 %v2030
          %2048 = vmatprep.subr.bf16.mxu0 0
          %2049 = vmatpush1.bf16.msra.mxu0 %v2031
          %2050 = vmatprep.subr.bf16.mxu0 0
          %2051 = vmatpush1.bf16.msra.mxu0 %v2032
          %2052 = vmatprep.subr.bf16.mxu0 0
          %2053 = vmatpush1.bf16.msra.mxu0 %v2033
          %2054 = vmatprep.subr.bf16.mxu0 0
          %2055 = vmatpush1.bf16.msra.mxu0 %v2034
          %2056 = vmatprep.subr.bf16.mxu0 0
          %2057 = vmatpush1.bf16.msra.mxu0 %v2035
          %2058 = vmatprep.subr.bf16.mxu0 0
          %2059 = vmatpush1.bf16.msra.mxu0 %v2036
          %2060 = vmatprep.subr.bf16.mxu0 0
          %2061 = vmatpush1.bf16.msra.mxu0 %v2037
          %2062 = vmatprep.subr.bf16.mxu0 0
          %2063 = vmatpush1.bf16.msra.mxu0 0
          %2064 = vmatprep.subr.bf16.mxu0 0
          %2065 = vmatpush1.bf16.msra.mxu0 0
          %2066 = vmatprep.subr.bf16.mxu0 0
          %2067 = vmatpush1.bf16.msra.mxu0 0
          %2068 = vmatprep.subr.bf16.mxu0 0
          %2069 = vmatpush1.bf16.msra.mxu0 0
          %2070 = vmatprep.subr.bf16.mxu0 0
          %2071 = vmatpush1.bf16.msra.mxu0 0
          %2072 = vmatprep.subr.bf16.mxu0 0
          %2073 = vmatpush1.bf16.msra.mxu0 0
          %2074 = vmatprep.subr.bf16.mxu0 0
          %2075 = vmatpush1.bf16.msra.mxu0 0
          %2076 = vmatprep.subr.bf16.mxu0 0
          %2077 = vmatpush1.bf16.msra.mxu0 0
          %2078 = vmatprep.mubr.bf16.mxu0 0
          %2079 = vmatmul.mubr.bf16.gmra.mrb[0].mxu0 %v1981
          %v2080 = vpop.f32.mrb[0].mxu0
          %v2081 = vadd.f32 0.0, %v2080
          %v2082 = vpop.f32.mrb[0].mxu0
          %v2083 = vpop.f32.mrb[0].mxu0
          %v2084 = vpop.f32.mrb[0].mxu0
          %2085 = vdwg.mxu0
          %v2086 = vmax.f32 %v2081, 0.0
          %v2087 = vpack.c.bf16 %v2086, %v2086
          %v2088 = vld [vmem:[%s8] sm:$0xf]
          %vm2089 = vcmask 64512
          %v2091 = vsel %vm2089, %v2087, 0
          %vm2093 = vcmask 1043456
          %v2095 = vsel %vm2093, %v2088, 0
          %2097 = vmatprep.subr.bf16.mxu0 0
          %2098 = vmatpush1.bf16.msra.mxu0 %v2095
          %2099 = vmatprep.subr.bf16.mxu0 0
          %2100 = vmatpush1.bf16.msra.mxu0 0
          %2101 = vmatprep.subr.bf16.mxu0 0
          %2102 = vmatpush1.bf16.msra.mxu0 0
          %2103 = vmatprep.subr.bf16.mxu0 0
          %2104 = vmatpush1.bf16.msra.mxu0 0
          %2105 = vmatprep.subr.bf16.mxu0 0
          %2106 = vmatpush1.bf16.msra.mxu0 0
          %2107 = vmatprep.subr.bf16.mxu0 0
          %2108 = vmatpush1.bf16.msra.mxu0 0
          %2109 = vmatprep.subr.bf16.mxu0 0
          %2110 = vmatpush1.bf16.msra.mxu0 0
          %2111 = vmatprep.subr.bf16.mxu0 0
          %2112 = vmatpush1.bf16.msra.mxu0 0
          %2113 = vmatprep.subr.bf16.mxu0 0
          %2114 = vmatpush1.bf16.msra.mxu0 0
          %2115 = vmatprep.subr.bf16.mxu0 0
          %2116 = vmatpush1.bf16.msra.mxu0 0
          %2117 = vmatprep.subr.bf16.mxu0 0
          %2118 = vmatpush1.bf16.msra.mxu0 0
          %2119 = vmatprep.subr.bf16.mxu0 0
          %2120 = vmatpush1.bf16.msra.mxu0 0
          %2121 = vmatprep.subr.bf16.mxu0 0
          %2122 = vmatpush1.bf16.msra.mxu0 0
          %2123 = vmatprep.subr.bf16.mxu0 0
          %2124 = vmatpush1.bf16.msra.mxu0 0
          %2125 = vmatprep.subr.bf16.mxu0 0
          %2126 = vmatpush1.bf16.msra.mxu0 0
          %2127 = vmatprep.subr.bf16.mxu0 0
          %2128 = vmatpush1.bf16.msra.mxu0 0
          %2129 = vmatprep.mubr.bf16.mxu0 0
          %2130 = vmatmul.mubr.bf16.gmra.mrb[0].mxu0 %v2091
          %v2131 = vpop.f32.mrb[0].mxu0
          %v2132 = vadd.f32 0.0, %v2131
          %v2133 = vpop.f32.mrb[0].mxu0
          %v2134 = vpop.f32.mrb[0].mxu0
          %v2135 = vpop.f32.mrb[0].mxu0
          %2136 = vdwg.mxu0
          %v2137 = vxor.u32 %v2132, 2147483648
          %v2138 = vmul.f32 %v2137, 1.442695
          %v2139 = vpow.pop %v2138
          %v2140 = vadd.f32 %v2139, 1.0
          %v2141 = vrcp.pop %v2140
          %v2142 = vmul.f32 1.0, %v2141
          %v2143 = vlaneseq
          %v2144 = vshrl.u32 %v2143, 7
          %v2145 = vsub.s32 0, %v2144
          %v2146 = vrot.slane %v2142, %v2145
          %v2147 = vmul.f32 %v1911, %v2146
          %v2148 = vmul.f32 %v1912, %v2146
          %v2149 = vmul.f32 %v1913, %v2146
          %v2150 = vmul.f32 %v1914, %v2146
          %v2151 = vmul.f32 %v1915, %v2146
          %v2152 = vmul.f32 %v1916, %v2146
          %v2153 = vmul.f32 %v1917, %v2146
          %v2154 = vmul.f32 %v1918, %v2146
          %v2155 = vmul.f32 %v1919, %v2146
          %v2156 = vmul.f32 %v1920, %v2146
          %v2157 = vmul.f32 %v1921, %v2146
          %v2158 = vmul.f32 %v1922, %v2146
          %v2159 = vmul.f32 %v1923, %v2146
          %v2160 = vmul.f32 %v1924, %v2146
          %v2161 = vmul.f32 %v1925, %v2146
          %v2162 = vmul.f32 %v1926, %v2146
          %v2163 = vmul.f32 %v1927, %v2146
          %v2164 = vmul.f32 %v1928, %v2146
          %v2165 = vmul.f32 %v1929, %v2146
          %v2166 = vmul.f32 %v1930, %v2146
          %v2167 = vmul.f32 %v1931, %v2146
          %v2168 = vmul.f32 %v1932, %v2146
          %v2169 = vmul.f32 %v1933, %v2146
          %v2170 = vmul.f32 %v1934, %v2146
          %v2171 = vmul.f32 %v1935, %v2146
          %v2172 = vmul.f32 %v1936, %v2146
          %v2173 = vmul.f32 %v1937, %v2146
          %v2174 = vmul.f32 %v1938, %v2146
          %v2175 = vmul.f32 %v1939, %v2146
          %v2176 = vmul.f32 %v1940, %v2146
          %v2177 = vmul.f32 %v1941, %v2146
          %v2178 = vmul.f32 %v1942, %v2146
          %v2179 = vld [vmem:[%s328] sm:$0xff]
          %v2180 = vld [vmem:[%s328 + $0x8] sm:$0xff]
          %v2181 = vld [vmem:[%s328 + $0x10] sm:$0xff]
          %v2182 = vld [vmem:[%s328 + $0x18] sm:$0xff]
          %v2183 = vld [vmem:[%s328 + $0x20] sm:$0xff]
          %v2184 = vld [vmem:[%s328 + $0x28] sm:$0xff]
          %v2185 = vld [vmem:[%s328 + $0x30] sm:$0xff]
          %v2186 = vld [vmem:[%s328 + $0x38] sm:$0xff]
          %v2187 = vld [vmem:[%s328 + $0x40] sm:$0xff]
          %v2188 = vld [vmem:[%s328 + $0x48] sm:$0xff]
          %v2189 = vld [vmem:[%s328 + $0x50] sm:$0xff]
          %v2190 = vld [vmem:[%s328 + $0x58] sm:$0xff]
          %v2191 = vld [vmem:[%s328 + $0x60] sm:$0xff]
          %v2192 = vld [vmem:[%s328 + $0x68] sm:$0xff]
          %v2193 = vld [vmem:[%s328 + $0x70] sm:$0xff]
          %v2194 = vld [vmem:[%s328 + $0x78] sm:$0xff]
          %v2195 = vld [vmem:[%s328 + $0x80] sm:$0xff]
          %v2196 = vld [vmem:[%s328 + $0x88] sm:$0xff]
          %v2197 = vld [vmem:[%s328 + $0x90] sm:$0xff]
          %v2198 = vld [vmem:[%s328 + $0x98] sm:$0xff]
          %v2199 = vld [vmem:[%s328 + $0xa0] sm:$0xff]
          %v2200 = vld [vmem:[%s328 + $0xa8] sm:$0xff]
          %v2201 = vld [vmem:[%s328 + $0xb0] sm:$0xff]
          %v2202 = vld [vmem:[%s328 + $0xb8] sm:$0xff]
          %v2203 = vld [vmem:[%s328 + $0xc0] sm:$0xff]
          %v2204 = vld [vmem:[%s328 + $0xc8] sm:$0xff]
          %v2205 = vld [vmem:[%s328 + $0xd0] sm:$0xff]
          %v2206 = vld [vmem:[%s328 + $0xd8] sm:$0xff]
          %v2207 = vld [vmem:[%s328 + $0xe0] sm:$0xff]
          %v2208 = vld [vmem:[%s328 + $0xe8] sm:$0xff]
          %v2209 = vld [vmem:[%s328 + $0xf0] sm:$0xff]
          %v2210 = vld [vmem:[%s328 + $0xf8] sm:$0xff]
          %v2211 = vadd.f32 %v2147, %v2179
          %v2212 = vadd.f32 %v2148, %v2180
          %v2213 = vadd.f32 %v2149, %v2181
          %v2214 = vadd.f32 %v2150, %v2182
          %v2215 = vadd.f32 %v2151, %v2183
          %v2216 = vadd.f32 %v2152, %v2184
          %v2217 = vadd.f32 %v2153, %v2185
          %v2218 = vadd.f32 %v2154, %v2186
          %v2219 = vadd.f32 %v2155, %v2187
          %v2220 = vadd.f32 %v2156, %v2188
          %v2221 = vadd.f32 %v2157, %v2189
          %v2222 = vadd.f32 %v2158, %v2190
          %v2223 = vadd.f32 %v2159, %v2191
          %v2224 = vadd.f32 %v2160, %v2192
          %v2225 = vadd.f32 %v2161, %v2193
          %v2226 = vadd.f32 %v2162, %v2194
          %v2227 = vadd.f32 %v2163, %v2195
          %v2228 = vadd.f32 %v2164, %v2196
          %v2229 = vadd.f32 %v2165, %v2197
          %v2230 = vadd.f32 %v2166, %v2198
          %v2231 = vadd.f32 %v2167, %v2199
          %v2232 = vadd.f32 %v2168, %v2200
          %v2233 = vadd.f32 %v2169, %v2201
          %v2234 = vadd.f32 %v2170, %v2202
          %v2235 = vadd.f32 %v2171, %v2203
          %v2236 = vadd.f32 %v2172, %v2204
          %v2237 = vadd.f32 %v2173, %v2205
          %v2238 = vadd.f32 %v2174, %v2206
          %v2239 = vadd.f32 %v2175, %v2207
          %v2240 = vadd.f32 %v2176, %v2208
          %v2241 = vadd.f32 %v2177, %v2209
          %v2242 = vadd.f32 %v2178, %v2210
          %v2243 = vmax.f32 %v2211, 0.0
          %v2244 = vmax.f32 %v2212, 0.0
          %v2245 = vmax.f32 %v2213, 0.0
          %v2246 = vmax.f32 %v2214, 0.0
          %v2247 = vmax.f32 %v2215, 0.0
          %v2248 = vmax.f32 %v2216, 0.0
          %v2249 = vmax.f32 %v2217, 0.0
          %v2250 = vmax.f32 %v2218, 0.0
          %v2251 = vmax.f32 %v2219, 0.0
          %v2252 = vmax.f32 %v2220, 0.0
          %v2253 = vmax.f32 %v2221, 0.0
          %v2254 = vmax.f32 %v2222, 0.0
          %v2255 = vmax.f32 %v2223, 0.0
          %v2256 = vmax.f32 %v2224, 0.0
          %v2257 = vmax.f32 %v2225, 0.0
          %v2258 = vmax.f32 %v2226, 0.0
          %v2259 = vmax.f32 %v2227, 0.0
          %v2260 = vmax.f32 %v2228, 0.0
          %v2261 = vmax.f32 %v2229, 0.0
          %v2262 = vmax.f32 %v2230, 0.0
          %v2263 = vmax.f32 %v2231, 0.0
          %v2264 = vmax.f32 %v2232, 0.0
          %v2265 = vmax.f32 %v2233, 0.0
          %v2266 = vmax.f32 %v2234, 0.0
          %v2267 = vmax.f32 %v2235, 0.0
          %v2268 = vmax.f32 %v2236, 0.0
          %v2269 = vmax.f32 %v2237, 0.0
          %v2270 = vmax.f32 %v2238, 0.0
          %v2271 = vmax.f32 %v2239, 0.0
          %v2272 = vmax.f32 %v2240, 0.0
          %v2273 = vmax.f32 %v2241, 0.0
          %v2274 = vmax.f32 %v2242, 0.0
          %2275 = vst [vmem:[%s362] sm:$0xff] %v2243
          %2276 = vst [vmem:[%s362 + $0x8] sm:$0xff] %v2244
          %2277 = vst [vmem:[%s362 + $0x10] sm:$0xff] %v2245
          %2278 = vst [vmem:[%s362 + $0x18] sm:$0xff] %v2246
          %2279 = vst [vmem:[%s362 + $0x20] sm:$0xff] %v2247
          %2280 = vst [vmem:[%s362 + $0x28] sm:$0xff] %v2248
          %2281 = vst [vmem:[%s362 + $0x30] sm:$0xff] %v2249
          %2282 = vst [vmem:[%s362 + $0x38] sm:$0xff] %v2250
          %2283 = vst [vmem:[%s362 + $0x40] sm:$0xff] %v2251
          %2284 = vst [vmem:[%s362 + $0x48] sm:$0xff] %v2252
          %2285 = vst [vmem:[%s362 + $0x50] sm:$0xff] %v2253
          %2286 = vst [vmem:[%s362 + $0x58] sm:$0xff] %v2254
          %2287 = vst [vmem:[%s362 + $0x60] sm:$0xff] %v2255
          %2288 = vst [vmem:[%s362 + $0x68] sm:$0xff] %v2256
          %2289 = vst [vmem:[%s362 + $0x70] sm:$0xff] %v2257
          %2290 = vst [vmem:[%s362 + $0x78] sm:$0xff] %v2258
          %2291 = vst [vmem:[%s362 + $0x80] sm:$0xff] %v2259
          %2292 = vst [vmem:[%s362 + $0x88] sm:$0xff] %v2260
          %2293 = vst [vmem:[%s362 + $0x90] sm:$0xff] %v2261
          %2294 = vst [vmem:[%s362 + $0x98] sm:$0xff] %v2262
          %2295 = vst [vmem:[%s362 + $0xa0] sm:$0xff] %v2263
          %2296 = vst [vmem:[%s362 + $0xa8] sm:$0xff] %v2264
          %2297 = vst [vmem:[%s362 + $0xb0] sm:$0xff] %v2265
          %2298 = vst [vmem:[%s362 + $0xb8] sm:$0xff] %v2266
          %2299 = vst [vmem:[%s362 + $0xc0] sm:$0xff] %v2267
          %2300 = vst [vmem:[%s362 + $0xc8] sm:$0xff] %v2268
          %2301 = vst [vmem:[%s362 + $0xd0] sm:$0xff] %v2269
          %2302 = vst [vmem:[%s362 + $0xd8] sm:$0xff] %v2270
          %2303 = vst [vmem:[%s362 + $0xe0] sm:$0xff] %v2271
          %2304 = vst [vmem:[%s362 + $0xe8] sm:$0xff] %v2272
          %2305 = vst [vmem:[%s362 + $0xf0] sm:$0xff] %v2273
          %2306 = vst [vmem:[%s362 + $0xf8] sm:$0xff] %v2274
        $region64: #{tpu_custom_call.1} parent=55 // pred_fallthru
          _
        %s2307 = sand.u32 %s240, 1
        %s2308 = scalar_lea.sflag [#allocation4], %s2307
        %s2309 = sand.u32 %s240, 1
        %s2310 = smul.addr %s2309, 256
        %s2311 = scalar_lea.vmem [#allocation5], %s2310
        // Predicated region
        $region65: #{tpu_custom_call.1} parent=55 // pred_check
          %p2312 = pneg %p250
        $region66: #{tpu_custom_call.1} parent=55 // pred_check_branch
          %2314 = sbr.rel (%p2312) target = $region68
        $region67: #{tpu_custom_call.1} parent=55 // pred_region
          %s2316 = ssub.s32 4096, 4096
          %2317 = vsyncadd %s2308, %s2316
          %s2318 = smul.addr %s30, 32
          %s2319 = smul.addr %s2318, 128
          %s2320 = scalar_lea.hbm %s9, %s2319
          %s2321 = sshll.u32 %s2311, 4
          %s2322 = int_to_ptr.vmem [resolvable:$true] %s2321
          %2327 = dma.vmem_to_hbm [thread:$0]  %s2322, 4096, %s2320, %s2308, 128, 128, 8
        $region68: #{tpu_custom_call.1} parent=55 // pred_fallthru
          _
      $region56: #{tpu_custom_call.1} parent=5 // pred_fallthru
        _
      %p2328 = scmp.le.s32.totalorder 2, %s21
      // Predicated region
      $region69: #{tpu_custom_call.1} parent=5 // pred_check
        %p2329 = pneg %p2328
      $region70: #{tpu_custom_call.1} parent=5 // pred_check_branch
        %2331 = sbr.rel (%p2329) target = $region72
      $region71: #{tpu_custom_call.1} parent=5 // pred_region
        %s2332 = ssub.s32 %s21, 2
        // Predicated region
        $region73: #{tpu_custom_call.1} parent=71 // pred_check
          %p2333 = pneg %p256
        $region74: #{tpu_custom_call.1} parent=71 // pred_check_branch
          %2335 = sbr.rel (%p2333) target = $region76
        $region75: #{tpu_custom_call.1} parent=71 // pred_region
          %s2336 = sand.u32 %s241, 1
          %s2337 = scalar_lea.sflag [#allocation4], %s2336
          %s2338 = sand.u32 %s241, 1
          %s2339 = smul.addr %s2338, 256
          %s2340 = scalar_lea.vmem [#allocation5], %s2339
          %2341 = dma.done %s2337, 4096
        $region76: #{tpu_custom_call.1} parent=71 // pred_fallthru
          _
      $region72: #{tpu_custom_call.1} parent=5 // pred_fallthru
        _
    $region6: #{tpu_custom_call.1} parent=1 // loop_footer
      %s25 = sadd.s32 1, %s21
    $region7: #{tpu_custom_call.1} parent=1 // loop_footer_branch
      %20 = sbr.rel target = $region3
    $region8: #{tpu_custom_call.1} parent=1 // loop_exit
      _
    %2342 = vsyncpa [#allocation3], 1
    %s2343 = scalar_lea.sflag [#allocation3], 1
    %2344 = vsyncpa %s2343, 1
    %2345 = vsyncpa [#allocation4], 1
    %s2346 = scalar_lea.sflag [#allocation4], 1
    %2347 = vsyncpa %s2346, 1

</llo_original>
